<compile_context>
chip_gen: v7x
topology: tpu7x:2x2x1
jax: 0.10.0
libtpu: 0.0.40
codegen_flags: <defaults>
</compile_context>

<pallas_src>
import functools

import numpy as np

import jax
import jax.numpy as jnp
from jax import lax
from jax.experimental import pallas as pl
from jax.experimental.pallas import tpu as pltpu


# Our in-kernel gate order (i, f, o, g) -> PyTorch row-block order (i, f, g, o).
_GATE_SRC = (0, 1, 3, 2)


def _nddiso_kernel(x_ref, w_ih_ref, w_hh_ref, b_ref, w_fc_ref, b_fc_ref,
                   out_ref, *, hidden_size, seq_len, batch, c_blk,
                   hoist_pre_gates, unroll):
    H, T, B = hidden_size, seq_len, batch
    cbH = c_blk * H
    N = 4 * cbH

    w_hh = w_hh_ref[0]                 # (cbH, N)  bf16, block-diagonal
    w_ih = w_ih_ref[0]                 # (c_blk, N) f32, block-structured
    bias = b_ref[0]                    # (1, N)    f32

    def sigmoid(z):
        # Single EUP tanh on the serial chain (no exp + reciprocal).
        return 0.5 * jnp.tanh(0.5 * z) + 0.5

    if hoist_pre_gates:
        # Bulk input+bias contribution for every timestep: one lane-dense
        # (B*T, c_blk) @ (c_blk, N) matmul -> (B, T, N), done once.
        x2 = x_ref[0].reshape(B * T, c_blk)
        pre_all = (jnp.dot(x2, w_ih, preferred_element_type=jnp.float32)
                   + bias).reshape(B, T, N)
    else:
        pre_all = None

    def pre_at(t):
        if hoist_pre_gates:
            if isinstance(t, int):
                return pre_all[:, t, :]
            return lax.dynamic_slice_in_dim(pre_all, t, 1, axis=1)[:, 0, :]
        if isinstance(t, int):
            x_t = x_ref[0, :, t, :]                               # (B, c_blk)
        else:
            x_t = x_ref[0, :, pl.ds(t, 1), :].reshape(B, c_blk)
        return jnp.dot(x_t, w_ih, preferred_element_type=jnp.float32) + bias

    def step(t, h, c):
        # Lane layout of gates: [ i(cbH) | f(cbH) | o(cbH) | g(cbH) ], each
        # gate group channel-major so gate slices line up with h/c lanes.
        gates = pre_at(t) + jnp.dot(h.astype(jnp.bfloat16), w_hh,
                                    preferred_element_type=jnp.float32)
        sig = sigmoid(gates[:, :3 * cbH])                 # one EUP pass
        i_g = sig[:, 0 * cbH:1 * cbH]
        f_g = sig[:, 1 * cbH:2 * cbH]
        o_g = sig[:, 2 * cbH:3 * cbH]
        g_g = jnp.tanh(gates[:, 3 * cbH:])
        c_new = f_g * c + i_g * g_g
        h_new = o_g * jnp.tanh(c_new)
        return h_new, c_new

    h = jnp.zeros((B, cbH), jnp.float32)
    c = jnp.zeros((B, cbH), jnp.float32)
    if T <= 64:
        # Full static unroll: static slices + full LLO scheduling visibility.
        for t in range(T):
            h, c = step(t, h, c)
    else:
        # TODO(synk): for very long sequences, make T a second ("arbitrary")
        # grid axis with h/c carried in VMEM scratch instead of full-T blocks.
        def body(t, carry):
            return step(t, *carry)
        h, c = lax.fori_loop(0, T, body, (h, c), unroll=unroll)

    # Fused per-channel Linear(H -> 1) head: one (B, cbH) @ (cbH, c_blk) dot
    # (kept f32; it is off the serial chain and feeds the output directly).
    out_ref[0] = (jnp.dot(h, w_fc_ref[0], preferred_element_type=jnp.float32)
                  + b_fc_ref[0])


def _pick_c_blk(num_channels, hidden_size, max_k=256):
    """Largest divisor of C with c_blk*H <= max_k (fills the MXU contraction
    depth).  No >=2-grid-step constraint (v5e/v6e are single-TensorCore); on
    v7x pass max_k=128 or an explicit c_blk so C//c_blk stays even."""
    best = 1
    for d in range(1, num_channels + 1):
        if num_channels % d == 0 and d * hidden_size <= max_k:
            best = d
    return best


def _pack_params(params, c_blk, hidden_size):
    """Pack per-channel LSTM/Linear weights into per-block, lane-dense,
    block-diagonal operands with gate-major / channel-minor lane layout."""
    w_ih, w_hh, b, w_fc, b_fc = (np.asarray(p, np.float32) for p in params)
    C, H = w_hh.shape[0], hidden_size
    grid_c = C // c_blk
    cbH = c_blk * H
    N = 4 * cbH

    w_hh_bd = np.zeros((grid_c, cbH, N), np.float32)
    w_ih_bd = np.zeros((grid_c, c_blk, N), np.float32)
    b_row = np.zeros((grid_c, 1, N), np.float32)
    w_fc_bd = np.zeros((grid_c, cbH, c_blk), np.float32)
    b_fc_row = np.zeros((grid_c, 1, c_blk), np.float32)

    for blk in range(grid_c):
        for c in range(c_blk):
            ch = blk * c_blk + c
            for gi, src in enumerate(_GATE_SRC):
                rows = slice(src * H, (src + 1) * H)
                cols = slice(gi * cbH + c * H, gi * cbH + (c + 1) * H)
                w_hh_bd[blk, c * H:(c + 1) * H, cols] = w_hh[ch, rows, :].T
                w_ih_bd[blk, c, cols] = w_ih[ch, rows, 0]
                b_row[blk, 0, cols] = b[ch, rows, 0]
            w_fc_bd[blk, c * H:(c + 1) * H, c] = w_fc[ch, 0, :]
            b_fc_row[blk, 0, c] = b_fc[ch, 0, 0]

    return (jnp.asarray(w_ih_bd),
            jnp.asarray(w_hh_bd).astype(jnp.bfloat16),   # bf16 MXU operand
            jnp.asarray(b_row),
            jnp.asarray(w_fc_bd),
            jnp.asarray(b_fc_row))


def _round_up(x, m):
    return (x + m - 1) // m * m


def nddiso_forward(x, params, *, c_blk=None, max_k=256, interpret=False):
    """x: (B, T, C) float32 -> (B, C) float32 (matches torch .squeeze())."""
    B, T, C = x.shape
    H = params[1].shape[-1]

    if c_blk is None:
        c_blk = _pick_c_blk(C, H, max_k)
    assert C % c_blk == 0, (C, c_blk)
    grid_c = C // c_blk
    cbH = c_blk * H
    N = 4 * cbH

    w_ih_bd, w_hh_bd, b_row, w_fc_bd, b_fc_row = _pack_params(params, c_blk, H)

    x_f32 = x.astype(jnp.float32)
    if grid_c == 1:
        x_blocks = x_f32[None]          # pure reshape, no extra HBM traffic
    else:
        # TODO(synk): for very large C, avoid this HBM relayout by DMA-ing the
        # channel blocks straight out of the (B, T, C) layout.
        x_blocks = jnp.transpose(x_f32.reshape(B, T, grid_c, c_blk),
                                 (2, 0, 1, 3))            # (grid_c, B, T, c_blk)

    # Padded-bytes VMEM accounting (sublanes pad to 8/16, lanes pad to 128).
    pre_bytes = T * _round_up(B, 8) * _round_up(N, 128) * 4
    hoist = pre_bytes <= (6 << 20)
    io_bytes = 2 * (                                       # double-buffered blocks
        B * _round_up(T, 8) * _round_up(c_blk, 128) * 4    # x
        + _round_up(c_blk, 8) * _round_up(N, 128) * 4      # w_ih
        + _round_up(cbH, 16) * _round_up(N, 128) * 2       # w_hh (bf16)
        + 8 * _round_up(N, 128) * 4                        # bias
        + _round_up(cbH, 8) * _round_up(c_blk, 128) * 4    # w_fc
        + 8 * _round_up(c_blk, 128) * 4                    # b_fc
        + _round_up(B, 8) * _round_up(c_blk, 128) * 4)     # out
    vmem_limit = int(min(max(io_bytes + (pre_bytes if hoist else 0)
                             + (8 << 20), 16 << 20), 56 << 20))

    kernel = functools.partial(
        _nddiso_kernel, hidden_size=H, seq_len=T, batch=B, c_blk=c_blk,
        hoist_pre_gates=hoist, unroll=4)

    out = pl.pallas_call(
        kernel,
        out_shape=jax.ShapeDtypeStruct((grid_c, B, c_blk), jnp.float32),
        grid_spec=pltpu.PrefetchScalarGridSpec(
            num_scalar_prefetch=0,
            grid=(grid_c,),
            in_specs=[
                pl.BlockSpec((1, B, T, c_blk), lambda i: (i, 0, 0, 0)),   # x
                pl.BlockSpec((1, c_blk, N), lambda i: (i, 0, 0)),         # w_ih
                pl.BlockSpec((1, cbH, N), lambda i: (i, 0, 0)),           # w_hh
                pl.BlockSpec((1, 1, N), lambda i: (i, 0, 0)),             # bias
                pl.BlockSpec((1, cbH, c_blk), lambda i: (i, 0, 0)),       # w_fc
                pl.BlockSpec((1, 1, c_blk), lambda i: (i, 0, 0)),         # b_fc
            ],
            out_specs=pl.BlockSpec((1, B, c_blk), lambda i: (i, 0, 0)),
        ),
        compiler_params=pltpu.CompilerParams(
            dimension_semantics=("parallel",),
            vmem_limit_bytes=vmem_limit),
        interpret=interpret,
    )(x_blocks, w_ih_bd, w_hh_bd, b_row, w_fc_bd, b_fc_row)

    return jnp.transpose(out, (1, 0, 2)).reshape(B, C)


def init_params(key, num_channels, hidden_size):
    """Deterministic synthetic weights, PyTorch-shaped, stacked over channels."""
    C, H = num_channels, hidden_size
    s = 1.0 / float(H) ** 0.5
    ks = jax.random.split(key, 6)
    w_ih = jax.random.uniform(ks[0], (C, 4 * H, 1), jnp.float32, -s, s)
    w_hh = jax.random.uniform(ks[1], (C, 4 * H, H), jnp.float32, -s, s)
    b_ih = jax.random.uniform(ks[2], (C, 4 * H, 1), jnp.float32, -s, s)
    b_hh = jax.random.uniform(ks[3], (C, 4 * H, 1), jnp.float32, -s, s)
    b = b_ih + b_hh
    w_fc = jax.random.uniform(ks[4], (C, 1, H), jnp.float32, -s, s)
    b_fc = jax.random.uniform(ks[5], (C, 1, 1), jnp.float32, -s, s)
    return w_ih, w_hh, b, w_fc, b_fc


def nddiso_ref(x, params, matmul_dtype=jnp.float32):
    """Pure-JAX mirror of the PyTorch forward (gate order i, f, g, o).
    matmul_dtype lets the recurrent matmul match the kernel's bf16 operands."""
    w_ih, w_hh, b, w_fc, b_fc = params
    B, T, C = x.shape
    H = w_hh.shape[-1]
    outs = []
    for i in range(C):
        xi = jnp.transpose(x[:, :, i].astype(jnp.float32))       # (T, B)
        w_hh_t = jnp.transpose(w_hh[i]).astype(matmul_dtype)     # (H, 4H)

        def step(carry, xt, i=i, w_hh_t=w_hh_t):
            h, c = carry
            gates = (xt[:, None] * w_ih[i, :, 0][None, :] + b[i, :, 0][None, :]
                     + jnp.dot(h.astype(matmul_dtype), w_hh_t,
                               preferred_element_type=jnp.float32))
            ig = jax.nn.sigmoid(gates[:, 0 * H:1 * H])
            fg = jax.nn.sigmoid(gates[:, 1 * H:2 * H])
            gg = jnp.tanh(gates[:, 2 * H:3 * H])
            og = jax.nn.sigmoid(gates[:, 3 * H:4 * H])
            c = fg * c + ig * gg
            h = og * jnp.tanh(c)
            return (h, c), None

        init = (jnp.zeros((B, H), jnp.float32), jnp.zeros((B, H), jnp.float32))
        (h, _), _ = lax.scan(step, init, xi)
        outs.append(jnp.dot(h, w_fc[i, 0]) + b_fc[i, 0, 0])      # (B,)
    return jnp.stack(outs, axis=1)                               # (B, C)


if __name__ == "__main__":
    B, T, C, H = 2, 8, 4, 32
    key = jax.random.PRNGKey(0)
    kx, kp = jax.random.split(key)
    x = jax.random.normal(kx, (B, T, C), dtype=jnp.float32)
    params = init_params(kp, C, H)

    out = jax.block_until_ready(nddiso_forward(x, params))
    assert out.shape == (B, C), out.shape

    # Tight check against a reference that applies the same bf16 rounding to
    # the recurrent matmul operands (accumulation in f32, like the kernel).
    ref_bf16 = jax.block_until_ready(nddiso_ref(x, params, jnp.bfloat16))
    assert jnp.allclose(out, ref_bf16, atol=1e-3, rtol=1e-3), (out, ref_bf16)

    # Loose check against the full-fp32 PyTorch semantics: bf16 MXU rounding
    # compounds over T recurrent steps but stays within a few 1e-3 here.
    ref_f32 = jax.block_until_ready(nddiso_ref(x, params, jnp.float32))
    assert jnp.allclose(out, ref_f32, atol=5e-2, rtol=0.0), (out, ref_f32)

    print("KERNEL_OK")
</pallas_src>

<mosaic_0001>
module attributes {stable_mosaic.version = 11 : i64} {
  func.func @_nddiso_kernel(%arg0: i32, %arg1: memref<1x2x8x4xf32, #tpu.memory_space<vmem>>, %arg2: memref<1x4x512xf32, #tpu.memory_space<vmem>>, %arg3: memref<1x128x512xbf16, #tpu.memory_space<vmem>>, %arg4: memref<1x1x512xf32, #tpu.memory_space<vmem>>, %arg5: memref<1x128x4xf32, #tpu.memory_space<vmem>>, %arg6: memref<1x1x4xf32, #tpu.memory_space<vmem>>, %arg7: memref<1x2x4xf32, #tpu.memory_space<vmem>>) attributes {dimension_semantics = [#tpu.dimension_semantics<parallel>], iteration_bounds = array<i64: 1>, scalar_prefetch = 0 : i64, scratch_operands = 0 : i64, tpu.core_type = #tpu.core_type<tc>, window_params = [{transform_indices = @transform_0, window_bounds = array<i64: 1, 2, 8, 4>}, {transform_indices = @transform_1, window_bounds = array<i64: 1, 4, 512>}, {transform_indices = @transform_2, window_bounds = array<i64: 1, 128, 512>}, {transform_indices = @transform_3, window_bounds = array<i64: 1, 1, 512>}, {transform_indices = @transform_4, window_bounds = array<i64: 1, 128, 4>}, {transform_indices = @transform_5, window_bounds = array<i64: 1, 1, 4>}, {transform_indices = @transform_6, window_bounds = array<i64: 1, 2, 4>}]} {
    %c0 = arith.constant 0 : index
    %c0_0 = arith.constant 0 : index
    %c0_1 = arith.constant 0 : index
    %0 = vector.load %arg3[%c0, %c0_0, %c0_1] : memref<1x128x512xbf16, #tpu.memory_space<vmem>>, vector<1x128x512xbf16>
    %1 = vector.shape_cast %0 : vector<1x128x512xbf16> to vector<128x512xbf16>
    %c0_2 = arith.constant 0 : index
    %c0_3 = arith.constant 0 : index
    %c0_4 = arith.constant 0 : index
    %2 = vector.load %arg2[%c0_2, %c0_3, %c0_4] : memref<1x4x512xf32, #tpu.memory_space<vmem>>, vector<1x4x512xf32>
    %3 = vector.shape_cast %2 : vector<1x4x512xf32> to vector<4x512xf32>
    %c0_5 = arith.constant 0 : index
    %c0_6 = arith.constant 0 : index
    %c0_7 = arith.constant 0 : index
    %4 = vector.load %arg4[%c0_5, %c0_6, %c0_7] : memref<1x1x512xf32, #tpu.memory_space<vmem>>, vector<1x1x512xf32>
    %5 = vector.shape_cast %4 : vector<1x1x512xf32> to vector<1x512xf32>
    %c0_8 = arith.constant 0 : index
    %c0_9 = arith.constant 0 : index
    %c0_10 = arith.constant 0 : index
    %c0_11 = arith.constant 0 : index
    %6 = vector.load %arg1[%c0_8, %c0_9, %c0_10, %c0_11] : memref<1x2x8x4xf32, #tpu.memory_space<vmem>>, vector<1x2x8x4xf32>
    %7 = vector.shape_cast %6 : vector<1x2x8x4xf32> to vector<2x8x4xf32>
    %8 = vector.shape_cast %7 : vector<2x8x4xf32> to vector<16x4xf32>
    %cst = arith.constant dense<0.000000e+00> : vector<16x512xf32>
    %9 = tpu.matmul %8, %3, %cst {dimension_numbers = #tpu.dot_dimension_numbers<[1], [0], [0], [1], [0, 0, 1, 1], [], []>} : vector<16x4xf32>, vector<4x512xf32>, vector<16x512xf32> -> vector<16x512xf32>
    %10 = vector.broadcast %5 : vector<1x512xf32> to vector<16x512xf32>
    %11 = arith.addf %9, %10 : vector<16x512xf32>
    %12 = vector.shape_cast %11 : vector<16x512xf32> to vector<2x8x512xf32>
    %cst_12 = arith.constant 0.000000e+00 : f32
    %13 = vector.broadcast %cst_12 : f32 to vector<2x128xf32>
    %cst_13 = arith.constant 0.000000e+00 : f32
    %14 = vector.broadcast %cst_13 : f32 to vector<2x128xf32>
    %15 = vector.extract_strided_slice %12 {offsets = [0, 0, 0], sizes = [2, 1, 512], strides = [1, 1, 1]} : vector<2x8x512xf32> to vector<2x1x512xf32>
    %16 = vector.shape_cast %15 : vector<2x1x512xf32> to vector<2x512xf32>
    %17 = arith.truncf %13 : vector<2x128xf32> to vector<2x128xbf16>
    %cst_14 = arith.constant dense<0.000000e+00> : vector<2x512xf32>
    %18 = tpu.matmul %17, %1, %cst_14 {dimension_numbers = #tpu.dot_dimension_numbers<[1], [0], [0], [1], [0, 0, 1, 1], [], []>} : vector<2x128xbf16>, vector<128x512xbf16>, vector<2x512xf32> -> vector<2x512xf32>
    %19 = arith.addf %16, %18 : vector<2x512xf32>
    %20 = vector.extract_strided_slice %19 {offsets = [0, 0], sizes = [2, 384], strides = [1, 1]} : vector<2x512xf32> to vector<2x384xf32>
    %cst_15 = arith.constant 5.000000e-01 : f32
    %21 = vector.broadcast %cst_15 : f32 to vector<2x384xf32>
    %22 = arith.mulf %21, %20 : vector<2x384xf32>
    %23 = math.tanh %22 : vector<2x384xf32>
    %cst_16 = arith.constant 5.000000e-01 : f32
    %24 = vector.broadcast %cst_16 : f32 to vector<2x384xf32>
    %25 = arith.mulf %24, %23 : vector<2x384xf32>
    %cst_17 = arith.constant 5.000000e-01 : f32
    %26 = vector.broadcast %cst_17 : f32 to vector<2x384xf32>
    %27 = arith.addf %25, %26 : vector<2x384xf32>
    %28 = vector.extract_strided_slice %27 {offsets = [0, 0], sizes = [2, 128], strides = [1, 1]} : vector<2x384xf32> to vector<2x128xf32>
    %29 = vector.extract_strided_slice %27 {offsets = [0, 128], sizes = [2, 128], strides = [1, 1]} : vector<2x384xf32> to vector<2x128xf32>
    %30 = vector.extract_strided_slice %27 {offsets = [0, 256], sizes = [2, 128], strides = [1, 1]} : vector<2x384xf32> to vector<2x128xf32>
    %31 = vector.extract_strided_slice %19 {offsets = [0, 384], sizes = [2, 128], strides = [1, 1]} : vector<2x512xf32> to vector<2x128xf32>
    %32 = math.tanh %31 : vector<2x128xf32>
    %33 = arith.mulf %29, %14 : vector<2x128xf32>
    %34 = arith.mulf %28, %32 : vector<2x128xf32>
    %35 = arith.addf %33, %34 : vector<2x128xf32>
    %36 = math.tanh %35 : vector<2x128xf32>
    %37 = arith.mulf %30, %36 : vector<2x128xf32>
    %38 = vector.extract_strided_slice %12 {offsets = [0, 1, 0], sizes = [2, 1, 512], strides = [1, 1, 1]} : vector<2x8x512xf32> to vector<2x1x512xf32>
    %39 = vector.shape_cast %38 : vector<2x1x512xf32> to vector<2x512xf32>
    %40 = arith.truncf %37 : vector<2x128xf32> to vector<2x128xbf16>
    %cst_18 = arith.constant dense<0.000000e+00> : vector<2x512xf32>
    %41 = tpu.matmul %40, %1, %cst_18 {dimension_numbers = #tpu.dot_dimension_numbers<[1], [0], [0], [1], [0, 0, 1, 1], [], []>} : vector<2x128xbf16>, vector<128x512xbf16>, vector<2x512xf32> -> vector<2x512xf32>
    %42 = arith.addf %39, %41 : vector<2x512xf32>
    %43 = vector.extract_strided_slice %42 {offsets = [0, 0], sizes = [2, 384], strides = [1, 1]} : vector<2x512xf32> to vector<2x384xf32>
    %cst_19 = arith.constant 5.000000e-01 : f32
    %44 = vector.broadcast %cst_19 : f32 to vector<2x384xf32>
    %45 = arith.mulf %44, %43 : vector<2x384xf32>
    %46 = math.tanh %45 : vector<2x384xf32>
    %cst_20 = arith.constant 5.000000e-01 : f32
    %47 = vector.broadcast %cst_20 : f32 to vector<2x384xf32>
    %48 = arith.mulf %47, %46 : vector<2x384xf32>
    %cst_21 = arith.constant 5.000000e-01 : f32
    %49 = vector.broadcast %cst_21 : f32 to vector<2x384xf32>
    %50 = arith.addf %48, %49 : vector<2x384xf32>
    %51 = vector.extract_strided_slice %50 {offsets = [0, 0], sizes = [2, 128], strides = [1, 1]} : vector<2x384xf32> to vector<2x128xf32>
    %52 = vector.extract_strided_slice %50 {offsets = [0, 128], sizes = [2, 128], strides = [1, 1]} : vector<2x384xf32> to vector<2x128xf32>
    %53 = vector.extract_strided_slice %50 {offsets = [0, 256], sizes = [2, 128], strides = [1, 1]} : vector<2x384xf32> to vector<2x128xf32>
    %54 = vector.extract_strided_slice %42 {offsets = [0, 384], sizes = [2, 128], strides = [1, 1]} : vector<2x512xf32> to vector<2x128xf32>
    %55 = math.tanh %54 : vector<2x128xf32>
    %56 = arith.mulf %52, %35 : vector<2x128xf32>
    %57 = arith.mulf %51, %55 : vector<2x128xf32>
    %58 = arith.addf %56, %57 : vector<2x128xf32>
    %59 = math.tanh %58 : vector<2x128xf32>
    %60 = arith.mulf %53, %59 : vector<2x128xf32>
    %61 = vector.extract_strided_slice %12 {offsets = [0, 2, 0], sizes = [2, 1, 512], strides = [1, 1, 1]} : vector<2x8x512xf32> to vector<2x1x512xf32>
    %62 = vector.shape_cast %61 : vector<2x1x512xf32> to vector<2x512xf32>
    %63 = arith.truncf %60 : vector<2x128xf32> to vector<2x128xbf16>
    %cst_22 = arith.constant dense<0.000000e+00> : vector<2x512xf32>
    %64 = tpu.matmul %63, %1, %cst_22 {dimension_numbers = #tpu.dot_dimension_numbers<[1], [0], [0], [1], [0, 0, 1, 1], [], []>} : vector<2x128xbf16>, vector<128x512xbf16>, vector<2x512xf32> -> vector<2x512xf32>
    %65 = arith.addf %62, %64 : vector<2x512xf32>
    %66 = vector.extract_strided_slice %65 {offsets = [0, 0], sizes = [2, 384], strides = [1, 1]} : vector<2x512xf32> to vector<2x384xf32>
    %cst_23 = arith.constant 5.000000e-01 : f32
    %67 = vector.broadcast %cst_23 : f32 to vector<2x384xf32>
    %68 = arith.mulf %67, %66 : vector<2x384xf32>
    %69 = math.tanh %68 : vector<2x384xf32>
    %cst_24 = arith.constant 5.000000e-01 : f32
    %70 = vector.broadcast %cst_24 : f32 to vector<2x384xf32>
    %71 = arith.mulf %70, %69 : vector<2x384xf32>
    %cst_25 = arith.constant 5.000000e-01 : f32
    %72 = vector.broadcast %cst_25 : f32 to vector<2x384xf32>
    %73 = arith.addf %71, %72 : vector<2x384xf32>
    %74 = vector.extract_strided_slice %73 {offsets = [0, 0], sizes = [2, 128], strides = [1, 1]} : vector<2x384xf32> to vector<2x128xf32>
    %75 = vector.extract_strided_slice %73 {offsets = [0, 128], sizes = [2, 128], strides = [1, 1]} : vector<2x384xf32> to vector<2x128xf32>
    %76 = vector.extract_strided_slice %73 {offsets = [0, 256], sizes = [2, 128], strides = [1, 1]} : vector<2x384xf32> to vector<2x128xf32>
    %77 = vector.extract_strided_slice %65 {offsets = [0, 384], sizes = [2, 128], strides = [1, 1]} : vector<2x512xf32> to vector<2x128xf32>
    %78 = math.tanh %77 : vector<2x128xf32>
    %79 = arith.mulf %75, %58 : vector<2x128xf32>
    %80 = arith.mulf %74, %78 : vector<2x128xf32>
    %81 = arith.addf %79, %80 : vector<2x128xf32>
    %82 = math.tanh %81 : vector<2x128xf32>
    %83 = arith.mulf %76, %82 : vector<2x128xf32>
    %84 = vector.extract_strided_slice %12 {offsets = [0, 3, 0], sizes = [2, 1, 512], strides = [1, 1, 1]} : vector<2x8x512xf32> to vector<2x1x512xf32>
    %85 = vector.shape_cast %84 : vector<2x1x512xf32> to vector<2x512xf32>
    %86 = arith.truncf %83 : vector<2x128xf32> to vector<2x128xbf16>
    %cst_26 = arith.constant dense<0.000000e+00> : vector<2x512xf32>
    %87 = tpu.matmul %86, %1, %cst_26 {dimension_numbers = #tpu.dot_dimension_numbers<[1], [0], [0], [1], [0, 0, 1, 1], [], []>} : vector<2x128xbf16>, vector<128x512xbf16>, vector<2x512xf32> -> vector<2x512xf32>
    %88 = arith.addf %85, %87 : vector<2x512xf32>
    %89 = vector.extract_strided_slice %88 {offsets = [0, 0], sizes = [2, 384], strides = [1, 1]} : vector<2x512xf32> to vector<2x384xf32>
    %cst_27 = arith.constant 5.000000e-01 : f32
    %90 = vector.broadcast %cst_27 : f32 to vector<2x384xf32>
    %91 = arith.mulf %90, %89 : vector<2x384xf32>
    %92 = math.tanh %91 : vector<2x384xf32>
    %cst_28 = arith.constant 5.000000e-01 : f32
    %93 = vector.broadcast %cst_28 : f32 to vector<2x384xf32>
    %94 = arith.mulf %93, %92 : vector<2x384xf32>
    %cst_29 = arith.constant 5.000000e-01 : f32
    %95 = vector.broadcast %cst_29 : f32 to vector<2x384xf32>
    %96 = arith.addf %94, %95 : vector<2x384xf32>
    %97 = vector.extract_strided_slice %96 {offsets = [0, 0], sizes = [2, 128], strides = [1, 1]} : vector<2x384xf32> to vector<2x128xf32>
    %98 = vector.extract_strided_slice %96 {offsets = [0, 128], sizes = [2, 128], strides = [1, 1]} : vector<2x384xf32> to vector<2x128xf32>
    %99 = vector.extract_strided_slice %96 {offsets = [0, 256], sizes = [2, 128], strides = [1, 1]} : vector<2x384xf32> to vector<2x128xf32>
    %100 = vector.extract_strided_slice %88 {offsets = [0, 384], sizes = [2, 128], strides = [1, 1]} : vector<2x512xf32> to vector<2x128xf32>
    %101 = math.tanh %100 : vector<2x128xf32>
    %102 = arith.mulf %98, %81 : vector<2x128xf32>
    %103 = arith.mulf %97, %101 : vector<2x128xf32>
    %104 = arith.addf %102, %103 : vector<2x128xf32>
    %105 = math.tanh %104 : vector<2x128xf32>
    %106 = arith.mulf %99, %105 : vector<2x128xf32>
    %107 = vector.extract_strided_slice %12 {offsets = [0, 4, 0], sizes = [2, 1, 512], strides = [1, 1, 1]} : vector<2x8x512xf32> to vector<2x1x512xf32>
    %108 = vector.shape_cast %107 : vector<2x1x512xf32> to vector<2x512xf32>
    %109 = arith.truncf %106 : vector<2x128xf32> to vector<2x128xbf16>
    %cst_30 = arith.constant dense<0.000000e+00> : vector<2x512xf32>
    %110 = tpu.matmul %109, %1, %cst_30 {dimension_numbers = #tpu.dot_dimension_numbers<[1], [0], [0], [1], [0, 0, 1, 1], [], []>} : vector<2x128xbf16>, vector<128x512xbf16>, vector<2x512xf32> -> vector<2x512xf32>
    %111 = arith.addf %108, %110 : vector<2x512xf32>
    %112 = vector.extract_strided_slice %111 {offsets = [0, 0], sizes = [2, 384], strides = [1, 1]} : vector<2x512xf32> to vector<2x384xf32>
    %cst_31 = arith.constant 5.000000e-01 : f32
    %113 = vector.broadcast %cst_31 : f32 to vector<2x384xf32>
    %114 = arith.mulf %113, %112 : vector<2x384xf32>
    %115 = math.tanh %114 : vector<2x384xf32>
    %cst_32 = arith.constant 5.000000e-01 : f32
    %116 = vector.broadcast %cst_32 : f32 to vector<2x384xf32>
    %117 = arith.mulf %116, %115 : vector<2x384xf32>
    %cst_33 = arith.constant 5.000000e-01 : f32
    %118 = vector.broadcast %cst_33 : f32 to vector<2x384xf32>
    %119 = arith.addf %117, %118 : vector<2x384xf32>
    %120 = vector.extract_strided_slice %119 {offsets = [0, 0], sizes = [2, 128], strides = [1, 1]} : vector<2x384xf32> to vector<2x128xf32>
    %121 = vector.extract_strided_slice %119 {offsets = [0, 128], sizes = [2, 128], strides = [1, 1]} : vector<2x384xf32> to vector<2x128xf32>
    %122 = vector.extract_strided_slice %119 {offsets = [0, 256], sizes = [2, 128], strides = [1, 1]} : vector<2x384xf32> to vector<2x128xf32>
    %123 = vector.extract_strided_slice %111 {offsets = [0, 384], sizes = [2, 128], strides = [1, 1]} : vector<2x512xf32> to vector<2x128xf32>
    %124 = math.tanh %123 : vector<2x128xf32>
    %125 = arith.mulf %121, %104 : vector<2x128xf32>
    %126 = arith.mulf %120, %124 : vector<2x128xf32>
    %127 = arith.addf %125, %126 : vector<2x128xf32>
    %128 = math.tanh %127 : vector<2x128xf32>
    %129 = arith.mulf %122, %128 : vector<2x128xf32>
    %130 = vector.extract_strided_slice %12 {offsets = [0, 5, 0], sizes = [2, 1, 512], strides = [1, 1, 1]} : vector<2x8x512xf32> to vector<2x1x512xf32>
    %131 = vector.shape_cast %130 : vector<2x1x512xf32> to vector<2x512xf32>
    %132 = arith.truncf %129 : vector<2x128xf32> to vector<2x128xbf16>
    %cst_34 = arith.constant dense<0.000000e+00> : vector<2x512xf32>
    %133 = tpu.matmul %132, %1, %cst_34 {dimension_numbers = #tpu.dot_dimension_numbers<[1], [0], [0], [1], [0, 0, 1, 1], [], []>} : vector<2x128xbf16>, vector<128x512xbf16>, vector<2x512xf32> -> vector<2x512xf32>
    %134 = arith.addf %131, %133 : vector<2x512xf32>
    %135 = vector.extract_strided_slice %134 {offsets = [0, 0], sizes = [2, 384], strides = [1, 1]} : vector<2x512xf32> to vector<2x384xf32>
    %cst_35 = arith.constant 5.000000e-01 : f32
    %136 = vector.broadcast %cst_35 : f32 to vector<2x384xf32>
    %137 = arith.mulf %136, %135 : vector<2x384xf32>
    %138 = math.tanh %137 : vector<2x384xf32>
    %cst_36 = arith.constant 5.000000e-01 : f32
    %139 = vector.broadcast %cst_36 : f32 to vector<2x384xf32>
    %140 = arith.mulf %139, %138 : vector<2x384xf32>
    %cst_37 = arith.constant 5.000000e-01 : f32
    %141 = vector.broadcast %cst_37 : f32 to vector<2x384xf32>
    %142 = arith.addf %140, %141 : vector<2x384xf32>
    %143 = vector.extract_strided_slice %142 {offsets = [0, 0], sizes = [2, 128], strides = [1, 1]} : vector<2x384xf32> to vector<2x128xf32>
    %144 = vector.extract_strided_slice %142 {offsets = [0, 128], sizes = [2, 128], strides = [1, 1]} : vector<2x384xf32> to vector<2x128xf32>
    %145 = vector.extract_strided_slice %142 {offsets = [0, 256], sizes = [2, 128], strides = [1, 1]} : vector<2x384xf32> to vector<2x128xf32>
    %146 = vector.extract_strided_slice %134 {offsets = [0, 384], sizes = [2, 128], strides = [1, 1]} : vector<2x512xf32> to vector<2x128xf32>
    %147 = math.tanh %146 : vector<2x128xf32>
    %148 = arith.mulf %144, %127 : vector<2x128xf32>
    %149 = arith.mulf %143, %147 : vector<2x128xf32>
    %150 = arith.addf %148, %149 : vector<2x128xf32>
    %151 = math.tanh %150 : vector<2x128xf32>
    %152 = arith.mulf %145, %151 : vector<2x128xf32>
    %153 = vector.extract_strided_slice %12 {offsets = [0, 6, 0], sizes = [2, 1, 512], strides = [1, 1, 1]} : vector<2x8x512xf32> to vector<2x1x512xf32>
    %154 = vector.shape_cast %153 : vector<2x1x512xf32> to vector<2x512xf32>
    %155 = arith.truncf %152 : vector<2x128xf32> to vector<2x128xbf16>
    %cst_38 = arith.constant dense<0.000000e+00> : vector<2x512xf32>
    %156 = tpu.matmul %155, %1, %cst_38 {dimension_numbers = #tpu.dot_dimension_numbers<[1], [0], [0], [1], [0, 0, 1, 1], [], []>} : vector<2x128xbf16>, vector<128x512xbf16>, vector<2x512xf32> -> vector<2x512xf32>
    %157 = arith.addf %154, %156 : vector<2x512xf32>
    %158 = vector.extract_strided_slice %157 {offsets = [0, 0], sizes = [2, 384], strides = [1, 1]} : vector<2x512xf32> to vector<2x384xf32>
    %cst_39 = arith.constant 5.000000e-01 : f32
    %159 = vector.broadcast %cst_39 : f32 to vector<2x384xf32>
    %160 = arith.mulf %159, %158 : vector<2x384xf32>
    %161 = math.tanh %160 : vector<2x384xf32>
    %cst_40 = arith.constant 5.000000e-01 : f32
    %162 = vector.broadcast %cst_40 : f32 to vector<2x384xf32>
    %163 = arith.mulf %162, %161 : vector<2x384xf32>
    %cst_41 = arith.constant 5.000000e-01 : f32
    %164 = vector.broadcast %cst_41 : f32 to vector<2x384xf32>
    %165 = arith.addf %163, %164 : vector<2x384xf32>
    %166 = vector.extract_strided_slice %165 {offsets = [0, 0], sizes = [2, 128], strides = [1, 1]} : vector<2x384xf32> to vector<2x128xf32>
    %167 = vector.extract_strided_slice %165 {offsets = [0, 128], sizes = [2, 128], strides = [1, 1]} : vector<2x384xf32> to vector<2x128xf32>
    %168 = vector.extract_strided_slice %165 {offsets = [0, 256], sizes = [2, 128], strides = [1, 1]} : vector<2x384xf32> to vector<2x128xf32>
    %169 = vector.extract_strided_slice %157 {offsets = [0, 384], sizes = [2, 128], strides = [1, 1]} : vector<2x512xf32> to vector<2x128xf32>
    %170 = math.tanh %169 : vector<2x128xf32>
    %171 = arith.mulf %167, %150 : vector<2x128xf32>
    %172 = arith.mulf %166, %170 : vector<2x128xf32>
    %173 = arith.addf %171, %172 : vector<2x128xf32>
    %174 = math.tanh %173 : vector<2x128xf32>
    %175 = arith.mulf %168, %174 : vector<2x128xf32>
    %176 = vector.extract_strided_slice %12 {offsets = [0, 7, 0], sizes = [2, 1, 512], strides = [1, 1, 1]} : vector<2x8x512xf32> to vector<2x1x512xf32>
    %177 = vector.shape_cast %176 : vector<2x1x512xf32> to vector<2x512xf32>
    %178 = arith.truncf %175 : vector<2x128xf32> to vector<2x128xbf16>
    %cst_42 = arith.constant dense<0.000000e+00> : vector<2x512xf32>
    %179 = tpu.matmul %178, %1, %cst_42 {dimension_numbers = #tpu.dot_dimension_numbers<[1], [0], [0], [1], [0, 0, 1, 1], [], []>} : vector<2x128xbf16>, vector<128x512xbf16>, vector<2x512xf32> -> vector<2x512xf32>
    %180 = arith.addf %177, %179 : vector<2x512xf32>
    %181 = vector.extract_strided_slice %180 {offsets = [0, 0], sizes = [2, 384], strides = [1, 1]} : vector<2x512xf32> to vector<2x384xf32>
    %cst_43 = arith.constant 5.000000e-01 : f32
    %182 = vector.broadcast %cst_43 : f32 to vector<2x384xf32>
    %183 = arith.mulf %182, %181 : vector<2x384xf32>
    %184 = math.tanh %183 : vector<2x384xf32>
    %cst_44 = arith.constant 5.000000e-01 : f32
    %185 = vector.broadcast %cst_44 : f32 to vector<2x384xf32>
    %186 = arith.mulf %185, %184 : vector<2x384xf32>
    %cst_45 = arith.constant 5.000000e-01 : f32
    %187 = vector.broadcast %cst_45 : f32 to vector<2x384xf32>
    %188 = arith.addf %186, %187 : vector<2x384xf32>
    %189 = vector.extract_strided_slice %188 {offsets = [0, 0], sizes = [2, 128], strides = [1, 1]} : vector<2x384xf32> to vector<2x128xf32>
    %190 = vector.extract_strided_slice %188 {offsets = [0, 128], sizes = [2, 128], strides = [1, 1]} : vector<2x384xf32> to vector<2x128xf32>
    %191 = vector.extract_strided_slice %188 {offsets = [0, 256], sizes = [2, 128], strides = [1, 1]} : vector<2x384xf32> to vector<2x128xf32>
    %192 = vector.extract_strided_slice %180 {offsets = [0, 384], sizes = [2, 128], strides = [1, 1]} : vector<2x512xf32> to vector<2x128xf32>
    %193 = math.tanh %192 : vector<2x128xf32>
    %194 = arith.mulf %190, %173 : vector<2x128xf32>
    %195 = arith.mulf %189, %193 : vector<2x128xf32>
    %196 = arith.addf %194, %195 : vector<2x128xf32>
    %197 = math.tanh %196 : vector<2x128xf32>
    %198 = arith.mulf %191, %197 : vector<2x128xf32>
    %c0_46 = arith.constant 0 : index
    %c0_47 = arith.constant 0 : index
    %c0_48 = arith.constant 0 : index
    %199 = vector.load %arg5[%c0_46, %c0_47, %c0_48] : memref<1x128x4xf32, #tpu.memory_space<vmem>>, vector<1x128x4xf32>
    %200 = vector.shape_cast %199 : vector<1x128x4xf32> to vector<128x4xf32>
    %cst_49 = arith.constant dense<0.000000e+00> : vector<2x4xf32>
    %201 = tpu.matmul %198, %200, %cst_49 {dimension_numbers = #tpu.dot_dimension_numbers<[1], [0], [0], [1], [0, 0, 1, 1], [], []>} : vector<2x128xf32>, vector<128x4xf32>, vector<2x4xf32> -> vector<2x4xf32>
    %c0_50 = arith.constant 0 : index
    %c0_51 = arith.constant 0 : index
    %c0_52 = arith.constant 0 : index
    %202 = vector.load %arg6[%c0_50, %c0_51, %c0_52] : memref<1x1x4xf32, #tpu.memory_space<vmem>>, vector<1x1x4xf32>
    %203 = vector.shape_cast %202 : vector<1x1x4xf32> to vector<1x4xf32>
    %204 = vector.broadcast %203 : vector<1x4xf32> to vector<2x4xf32>
    %205 = arith.addf %201, %204 : vector<2x4xf32>
    %c0_53 = arith.constant 0 : index
    %c0_54 = arith.constant 0 : index
    %c0_55 = arith.constant 0 : index
    %206 = vector.load %arg7[%c0_53, %c0_54, %c0_55] : memref<1x2x4xf32, #tpu.memory_space<vmem>>, vector<1x2x4xf32>
    %207 = vector.shape_cast %206 : vector<1x2x4xf32> to vector<2x4xf32>
    %208 = vector.shape_cast %205 : vector<2x4xf32> to vector<1x2x4xf32>
    tpu.vector_store %arg7[%c0_53, %c0_54, %c0_55], %208 {strides = array<i32>} : memref<1x2x4xf32, #tpu.memory_space<vmem>>, vector<1x2x4xf32>,
    return
  }
  func.func @transform_0(%arg0: i32) -> (i32, i32, i32, i32) {
    %c0_i32 = arith.constant 0 : i32
    %c0_i32_0 = arith.constant 0 : i32
    %c0_i32_1 = arith.constant 0 : i32
    %c0_i32_2 = arith.constant 0 : i32
    return %arg0, %c0_i32, %c0_i32_0, %c0_i32_1 : i32, i32, i32, i32
  }
  func.func @transform_1(%arg0: i32) -> (i32, i32, i32) {
    %c0_i32 = arith.constant 0 : i32
    %c0_i32_0 = arith.constant 0 : i32
    %c0_i32_1 = arith.constant 0 : i32
    return %arg0, %c0_i32, %c0_i32_0 : i32, i32, i32
  }
  func.func @transform_2(%arg0: i32) -> (i32, i32, i32) {
    %c0_i32 = arith.constant 0 : i32
    %c0_i32_0 = arith.constant 0 : i32
    %c0_i32_1 = arith.constant 0 : i32
    return %arg0, %c0_i32, %c0_i32_0 : i32, i32, i32
  }
  func.func @transform_3(%arg0: i32) -> (i32, i32, i32) {
    %c0_i32 = arith.constant 0 : i32
    %c0_i32_0 = arith.constant 0 : i32
    %c0_i32_1 = arith.constant 0 : i32
    return %arg0, %c0_i32, %c0_i32_0 : i32, i32, i32
  }
  func.func @transform_4(%arg0: i32) -> (i32, i32, i32) {
    %c0_i32 = arith.constant 0 : i32
    %c0_i32_0 = arith.constant 0 : i32
    %c0_i32_1 = arith.constant 0 : i32
    return %arg0, %c0_i32, %c0_i32_0 : i32, i32, i32
  }
  func.func @transform_5(%arg0: i32) -> (i32, i32, i32) {
    %c0_i32 = arith.constant 0 : i32
    %c0_i32_0 = arith.constant 0 : i32
    %c0_i32_1 = arith.constant 0 : i32
    return %arg0, %c0_i32, %c0_i32_0 : i32, i32, i32
  }
  func.func @transform_6(%arg0: i32) -> (i32, i32, i32) {
    %c0_i32 = arith.constant 0 : i32
    %c0_i32_0 = arith.constant 0 : i32
    %c0_i32_1 = arith.constant 0 : i32
    return %arg0, %c0_i32, %c0_i32_0 : i32, i32, i32
  }
}

</mosaic_0001>

<llo_original>
// kernel: tpu_custom_call.1
$region0: #{tpu_custom_call.1}
  #allocation0 [shape = 'u32[]', space=smem, size = 0x4, offset = 0x4, fixed_abs, tag = 'smem constant byte address 0x4 - core index']
  #allocation1 [shape = 'u32[144,128]{1,0:T(1,128)}', space=vmem, size = 0x12000, scoped, tag = 'internal scratch']
  %s0 = inlined_call_operand.vmem [shape: f32[1,2,8,4], index: 0, kind: input, shape index: {}]
  %s1 = inlined_call_operand.vmem [shape: f32[1,4,512], index: 1, kind: input, shape index: {}]
  %s2 = inlined_call_operand.hbm [shape: bf16[1,128,512], index: 2, kind: input, shape index: {}]
  %s3 = inlined_call_operand.vmem [shape: f32[1,1,512], index: 3, kind: input, shape index: {}]
  %s4 = inlined_call_operand.vmem [shape: f32[1,128,4], index: 4, kind: input, shape index: {}]
  %s5 = inlined_call_operand.vmem [shape: f32[1,1,4], index: 5, kind: input, shape index: {}]
  %s6 = inlined_call_operand.hbm [shape: f32[1,2,4], index: 6, kind: output, shape index: {}]
  %s7 = sld [smem:[#allocation0]]
  $region38: #{tpu_custom_call.1} parent=0
    _
  %s9 = ssub.s32 1, %s7
  %s10 = scalar_select 0, %s9, %s7
  $region1: #{tpu_custom_call.1} parent=0
    #allocation2 [shape = 'u8[131072]{0}', space=vmem, size = 0x20000, scoped, tag = 'input window, operand 2, single buffered']
    #allocation3 [shape = 's32[1]{0}', space=sflag, size = 0x4, scoped, tag = 'scoped memory for tpu_custom_call.1']
    #allocation4 [shape = 's32[1]{0}', space=sflag, size = 0x4, scoped, tag = 'scoped memory for tpu_custom_call.1']
    #allocation5 [shape = 'u8[1024]{0}', space=vmem, size = 0x400, scoped, tag = 'output window, operand 0, single buffered']
    %11 = vsyncpa [#allocation3], 0
    %12 = vsyncpa [#allocation4], 0
    // Predicated region
    $region2: #{tpu_custom_call.1} parent=1 // pred_check
      _
    $region3: #{tpu_custom_call.1} parent=1 // pred_check_branch
      %14 = sbr.rel (0) target = $region5
    $region4: #{tpu_custom_call.1} parent=1 // pred_region
      _
    $region5: #{tpu_custom_call.1} parent=1 // pred_fallthru
      _
    // Predicated region
    $region6: #{tpu_custom_call.1} parent=1 // pred_check
      _
    $region7: #{tpu_custom_call.1} parent=1 // pred_check_branch
      %16 = sbr.rel (0) target = $region9
    $region8: #{tpu_custom_call.1} parent=1 // pred_region
      _
    $region9: #{tpu_custom_call.1} parent=1 // pred_fallthru
      _
    // Predicated region
    $region10: #{tpu_custom_call.1} parent=1 // pred_check
      _
    $region11: #{tpu_custom_call.1} parent=1 // pred_check_branch
      %18 = sbr.rel (0) target = $region13
    $region12: #{tpu_custom_call.1} parent=1 // pred_region
      %s20 = ssub.s32 4096, 4096
      %21 = vsyncadd [#allocation3], %s20
      %s22 = sshll.u32 [#allocation2], 4
      %s23 = int_to_ptr.vmem [resolvable:$true] %s22
      %28 = dma.hbm_to_vmem [thread:$0]  %s2, 4096, %s23, [#allocation3], 256, 256, 16
    $region13: #{tpu_custom_call.1} parent=1 // pred_fallthru
      _
    // Predicated region
    $region14: #{tpu_custom_call.1} parent=1 // pred_check
      _
    $region15: #{tpu_custom_call.1} parent=1 // pred_check_branch
      %30 = sbr.rel (0) target = $region17
    $region16: #{tpu_custom_call.1} parent=1 // pred_region
      _
    $region17: #{tpu_custom_call.1} parent=1 // pred_fallthru
      _
    // Predicated region
    $region18: #{tpu_custom_call.1} parent=1 // pred_check
      _
    $region19: #{tpu_custom_call.1} parent=1 // pred_check_branch
      %32 = sbr.rel (0) target = $region21
    $region20: #{tpu_custom_call.1} parent=1 // pred_region
      _
    $region21: #{tpu_custom_call.1} parent=1 // pred_fallthru
      _
    // Predicated region
    $region22: #{tpu_custom_call.1} parent=1 // pred_check
      _
    $region23: #{tpu_custom_call.1} parent=1 // pred_check_branch
      %34 = sbr.rel (0) target = $region25
    $region24: #{tpu_custom_call.1} parent=1 // pred_region
      _
    $region25: #{tpu_custom_call.1} parent=1 // pred_fallthru
      _
    // Predicated region
    $region26: #{tpu_custom_call.1} parent=1 // pred_check
      _
    $region27: #{tpu_custom_call.1} parent=1 // pred_check_branch
      %36 = sbr.rel (0) target = $region29
    $region28: #{tpu_custom_call.1} parent=1 // pred_region
      %37 = dma.done [#allocation3], 4096
    $region29: #{tpu_custom_call.1} parent=1 // pred_fallthru
      _
    %v39 = vld [vmem:[#allocation2] sm:$0xff]
    %v40 = vld [vmem:[#allocation2 + $0x8] sm:$0xff]
    %v41 = vld [vmem:[#allocation2 + $0x10] sm:$0xff]
    %v42 = vld [vmem:[#allocation2 + $0x18] sm:$0xff]
    %v43 = vld [vmem:[#allocation2 + $0x20] sm:$0xff]
    %v44 = vld [vmem:[#allocation2 + $0x28] sm:$0xff]
    %v45 = vld [vmem:[#allocation2 + $0x30] sm:$0xff]
    %v46 = vld [vmem:[#allocation2 + $0x38] sm:$0xff]
    %v47 = vld [vmem:[#allocation2 + $0x40] sm:$0xff]
    %v48 = vld [vmem:[#allocation2 + $0x48] sm:$0xff]
    %v49 = vld [vmem:[#allocation2 + $0x50] sm:$0xff]
    %v50 = vld [vmem:[#allocation2 + $0x58] sm:$0xff]
    %v51 = vld [vmem:[#allocation2 + $0x60] sm:$0xff]
    %v52 = vld [vmem:[#allocation2 + $0x68] sm:$0xff]
    %v53 = vld [vmem:[#allocation2 + $0x70] sm:$0xff]
    %v54 = vld [vmem:[#allocation2 + $0x78] sm:$0xff]
    %v55 = vld [vmem:[#allocation2 + $0x80] sm:$0xff]
    %v56 = vld [vmem:[#allocation2 + $0x88] sm:$0xff]
    %v57 = vld [vmem:[#allocation2 + $0x90] sm:$0xff]
    %v58 = vld [vmem:[#allocation2 + $0x98] sm:$0xff]
    %v59 = vld [vmem:[#allocation2 + $0xa0] sm:$0xff]
    %v60 = vld [vmem:[#allocation2 + $0xa8] sm:$0xff]
    %v61 = vld [vmem:[#allocation2 + $0xb0] sm:$0xff]
    %v62 = vld [vmem:[#allocation2 + $0xb8] sm:$0xff]
    %v63 = vld [vmem:[#allocation2 + $0xc0] sm:$0xff]
    %v64 = vld [vmem:[#allocation2 + $0xc8] sm:$0xff]
    %v65 = vld [vmem:[#allocation2 + $0xd0] sm:$0xff]
    %v66 = vld [vmem:[#allocation2 + $0xd8] sm:$0xff]
    %v67 = vld [vmem:[#allocation2 + $0xe0] sm:$0xff]
    %v68 = vld [vmem:[#allocation2 + $0xe8] sm:$0xff]
    %v69 = vld [vmem:[#allocation2 + $0xf0] sm:$0xff]
    %v70 = vld [vmem:[#allocation2 + $0xf8] sm:$0xff]
    %v71 = vld [vmem:[%s1] sm:$0xff]
    %v72 = vld [vmem:[%s1 + $0x8] sm:$0xff]
    %v73 = vld [vmem:[%s3] sm:$0xf]
    %v74 = vld [vmem:[%s0] sm:$0xff]
    %v75 = vld [vmem:[%s0 + $0x8] sm:$0xff]
    %v77 = vlaneseq
    %v78 = vshrl.u32 %v77, 7
    %v79 = vsub.s32 0, %v78
    %v80 = vrot.slane %v73, %v79
    %v81 = vlaneseq
    %v82 = vshrl.u32 %v81, 7
    %v83 = vsub.s32 1, %v82
    %v84 = vrot.slane %v73, %v83
    %v85 = vlaneseq
    %v86 = vshrl.u32 %v85, 7
    %v87 = vsub.s32 2, %v86
    %v88 = vrot.slane %v73, %v87
    %v89 = vlaneseq
    %v90 = vshrl.u32 %v89, 7
    %v91 = vsub.s32 3, %v90
    %v92 = vrot.slane %v73, %v91
    %v99 = vcombine.high %v71, %v71
    %v100 = vcombine.high %v72, %v72
    %vm101 = vcmask 31744
    %v103 = vsel %vm101, %v74, 0
    %v106 = vsel %vm101, %v75, 0
    %vm108 = vcmask 1043456
    %v109 = vsel %vm108, %v71, 0
    %v111 = vsel %vm108, %v99, 0
    %v113 = vsel %vm108, %v72, 0
    %v115 = vsel %vm108, %v100, 0
    %117 = vmatprep.subr.mxu0 %v111
    %118 = vmatpush1.msra.mxu0 %v109
    %119 = vmatprep.subr.mxu0 0.0
    %120 = vmatpush1.msra.mxu0 0.0
    %121 = vmatprep.subr.mxu0 0.0
    %122 = vmatpush1.msra.mxu0 0.0
    %123 = vmatprep.subr.mxu0 0.0
    %124 = vmatpush1.msra.mxu0 0.0
    %125 = vmatprep.subr.mxu0 0.0
    %126 = vmatpush1.msra.mxu0 0.0
    %127 = vmatprep.subr.mxu0 0.0
    %128 = vmatpush1.msra.mxu0 0.0
    %129 = vmatprep.subr.mxu0 0.0
    %130 = vmatpush1.msra.mxu0 0.0
    %131 = vmatprep.subr.mxu0 0.0
    %132 = vmatpush1.msra.mxu0 0.0
    %133 = vmatprep.subr.mxu0 0.0
    %134 = vmatpush1.msra.mxu0 0.0
    %135 = vmatprep.subr.mxu0 0.0
    %136 = vmatpush1.msra.mxu0 0.0
    %137 = vmatprep.subr.mxu0 0.0
    %138 = vmatpush1.msra.mxu0 0.0
    %139 = vmatprep.subr.mxu0 0.0
    %140 = vmatpush1.msra.mxu0 0.0
    %141 = vmatprep.subr.mxu0 0.0
    %142 = vmatpush1.msra.mxu0 0.0
    %143 = vmatprep.subr.mxu0 0.0
    %144 = vmatpush1.msra.mxu0 0.0
    %145 = vmatprep.subr.mxu0 0.0
    %146 = vmatpush1.msra.mxu0 0.0
    %147 = vmatprep.subr.mxu0 0.0
    %148 = vmatpush1.msra.mxu0 0.0
    %149 = vmatprep.subr.mxu0 0.0
    %150 = vmatpush1.msra.mxu0 0.0
    %151 = vmatprep.subr.mxu0 0.0
    %152 = vmatpush1.msra.mxu0 0.0
    %153 = vmatprep.subr.mxu0 0.0
    %154 = vmatpush1.msra.mxu0 0.0
    %155 = vmatprep.subr.mxu0 0.0
    %156 = vmatpush1.msra.mxu0 0.0
    %157 = vmatprep.subr.mxu0 0.0
    %158 = vmatpush1.msra.mxu0 0.0
    %159 = vmatprep.subr.mxu0 0.0
    %160 = vmatpush1.msra.mxu0 0.0
    %161 = vmatprep.subr.mxu0 0.0
    %162 = vmatpush1.msra.mxu0 0.0
    %163 = vmatprep.subr.mxu0 0.0
    %164 = vmatpush1.msra.mxu0 0.0
    %165 = vmatprep.subr.mxu0 0.0
    %166 = vmatpush1.msra.mxu0 0.0
    %167 = vmatprep.subr.mxu0 0.0
    %168 = vmatpush1.msra.mxu0 0.0
    %169 = vmatprep.subr.mxu0 0.0
    %170 = vmatpush1.msra.mxu0 0.0
    %171 = vmatprep.subr.mxu0 0.0
    %172 = vmatpush1.msra.mxu0 0.0
    %173 = vmatprep.subr.mxu0 0.0
    %174 = vmatpush1.msra.mxu0 0.0
    %175 = vmatprep.subr.mxu0 0.0
    %176 = vmatpush1.msra.mxu0 0.0
    %177 = vmatprep.subr.mxu0 0.0
    %178 = vmatpush1.msra.mxu0 0.0
    %179 = vmatprep.subr.mxu0 0.0
    %180 = vmatpush1.msra.mxu0 0.0
    %181 = vmatprep.mubr.f32.mxu0 0.0
    %182 = vmatmul.mubr.f32.gmra.mrb[0].mxu0 %v103
    %v183 = vpop.f32.mrb[0].mxu0
    %v184 = vadd.f32 %v80, %v183
    %v185 = vpop.f32.mrb[0].mxu0
    %v186 = vadd.f32 %v84, %v185
    %187 = vmatprep.mubr.f32.mxu0 0.0
    %188 = vmatmul.mubr.f32.gmra.mrb[0].mxu0 %v106
    %v189 = vpop.f32.mrb[0].mxu0
    %v190 = vadd.f32 %v80, %v189
    %v191 = vpop.f32.mrb[0].mxu0
    %v192 = vadd.f32 %v84, %v191
    %193 = vdwg.mxu0
    %194 = vmatprep.subr.mxu0 %v115
    %195 = vmatpush1.msra.mxu0 %v113
    %196 = vmatprep.subr.mxu0 0.0
    %197 = vmatpush1.msra.mxu0 0.0
    %198 = vmatprep.subr.mxu0 0.0
    %199 = vmatpush1.msra.mxu0 0.0
    %200 = vmatprep.subr.mxu0 0.0
    %201 = vmatpush1.msra.mxu0 0.0
    %202 = vmatprep.subr.mxu0 0.0
    %203 = vmatpush1.msra.mxu0 0.0
    %204 = vmatprep.subr.mxu0 0.0
    %205 = vmatpush1.msra.mxu0 0.0
    %206 = vmatprep.subr.mxu0 0.0
    %207 = vmatpush1.msra.mxu0 0.0
    %208 = vmatprep.subr.mxu0 0.0
    %209 = vmatpush1.msra.mxu0 0.0
    %210 = vmatprep.subr.mxu0 0.0
    %211 = vmatpush1.msra.mxu0 0.0
    %212 = vmatprep.subr.mxu0 0.0
    %213 = vmatpush1.msra.mxu0 0.0
    %214 = vmatprep.subr.mxu0 0.0
    %215 = vmatpush1.msra.mxu0 0.0
    %216 = vmatprep.subr.mxu0 0.0
    %217 = vmatpush1.msra.mxu0 0.0
    %218 = vmatprep.subr.mxu0 0.0
    %219 = vmatpush1.msra.mxu0 0.0
    %220 = vmatprep.subr.mxu0 0.0
    %221 = vmatpush1.msra.mxu0 0.0
    %222 = vmatprep.subr.mxu0 0.0
    %223 = vmatpush1.msra.mxu0 0.0
    %224 = vmatprep.subr.mxu0 0.0
    %225 = vmatpush1.msra.mxu0 0.0
    %226 = vmatprep.subr.mxu0 0.0
    %227 = vmatpush1.msra.mxu0 0.0
    %228 = vmatprep.subr.mxu0 0.0
    %229 = vmatpush1.msra.mxu0 0.0
    %230 = vmatprep.subr.mxu0 0.0
    %231 = vmatpush1.msra.mxu0 0.0
    %232 = vmatprep.subr.mxu0 0.0
    %233 = vmatpush1.msra.mxu0 0.0
    %234 = vmatprep.subr.mxu0 0.0
    %235 = vmatpush1.msra.mxu0 0.0
    %236 = vmatprep.subr.mxu0 0.0
    %237 = vmatpush1.msra.mxu0 0.0
    %238 = vmatprep.subr.mxu0 0.0
    %239 = vmatpush1.msra.mxu0 0.0
    %240 = vmatprep.subr.mxu0 0.0
    %241 = vmatpush1.msra.mxu0 0.0
    %242 = vmatprep.subr.mxu0 0.0
    %243 = vmatpush1.msra.mxu0 0.0
    %244 = vmatprep.subr.mxu0 0.0
    %245 = vmatpush1.msra.mxu0 0.0
    %246 = vmatprep.subr.mxu0 0.0
    %247 = vmatpush1.msra.mxu0 0.0
    %248 = vmatprep.subr.mxu0 0.0
    %249 = vmatpush1.msra.mxu0 0.0
    %250 = vmatprep.subr.mxu0 0.0
    %251 = vmatpush1.msra.mxu0 0.0
    %252 = vmatprep.subr.mxu0 0.0
    %253 = vmatpush1.msra.mxu0 0.0
    %254 = vmatprep.subr.mxu0 0.0
    %255 = vmatpush1.msra.mxu0 0.0
    %256 = vmatprep.subr.mxu0 0.0
    %257 = vmatpush1.msra.mxu0 0.0
    %258 = vmatprep.mubr.f32.mxu0 0.0
    %259 = vmatmul.mubr.f32.gmra.mrb[0].mxu0 %v103
    %v260 = vpop.f32.mrb[0].mxu0
    %v261 = vadd.f32 %v88, %v260
    %v262 = vpop.f32.mrb[0].mxu0
    %v263 = vadd.f32 %v92, %v262
    %264 = vmatprep.mubr.f32.mxu0 0.0
    %265 = vmatmul.mubr.f32.gmra.mrb[0].mxu0 %v106
    %v266 = vpop.f32.mrb[0].mxu0
    %v267 = vadd.f32 %v88, %v266
    %v268 = vpop.f32.mrb[0].mxu0
    %v269 = vadd.f32 %v92, %v268
    %270 = vdwg.mxu0
    %v303 = vunpack.c.l.b16 %v39
    %v304 = vunpack.c.h.b16 %v39
    %v305 = vunpack.c.l.b16 %v40
    %v306 = vunpack.c.h.b16 %v40
    %v307 = vunpack.c.l.b16 %v41
    %v308 = vunpack.c.h.b16 %v41
    %v309 = vunpack.c.l.b16 %v42
    %v310 = vunpack.c.h.b16 %v42
    %v311 = vunpack.c.l.b16 %v43
    %v312 = vunpack.c.h.b16 %v43
    %v313 = vunpack.c.l.b16 %v44
    %v314 = vunpack.c.h.b16 %v44
    %v315 = vunpack.c.l.b16 %v45
    %v316 = vunpack.c.h.b16 %v45
    %v317 = vunpack.c.l.b16 %v46
    %v318 = vunpack.c.h.b16 %v46
    %v319 = vunpack.c.l.b16 %v47
    %v320 = vunpack.c.h.b16 %v47
    %v321 = vunpack.c.l.b16 %v48
    %v322 = vunpack.c.h.b16 %v48
    %v323 = vunpack.c.l.b16 %v49
    %v324 = vunpack.c.h.b16 %v49
    %v325 = vunpack.c.l.b16 %v50
    %v326 = vunpack.c.h.b16 %v50
    %v327 = vunpack.c.l.b16 %v51
    %v328 = vunpack.c.h.b16 %v51
    %v329 = vunpack.c.l.b16 %v52
    %v330 = vunpack.c.h.b16 %v52
    %v331 = vunpack.c.l.b16 %v53
    %v332 = vunpack.c.h.b16 %v53
    %v333 = vunpack.c.l.b16 %v54
    %v334 = vunpack.c.h.b16 %v54
    %v335 = vunpack.c.l.b16 %v55
    %v336 = vunpack.c.h.b16 %v55
    %v337 = vunpack.c.l.b16 %v56
    %v338 = vunpack.c.h.b16 %v56
    %v339 = vunpack.c.l.b16 %v57
    %v340 = vunpack.c.h.b16 %v57
    %v341 = vunpack.c.l.b16 %v58
    %v342 = vunpack.c.h.b16 %v58
    %v343 = vunpack.c.l.b16 %v59
    %v344 = vunpack.c.h.b16 %v59
    %v345 = vunpack.c.l.b16 %v60
    %v346 = vunpack.c.h.b16 %v60
    %v347 = vunpack.c.l.b16 %v61
    %v348 = vunpack.c.h.b16 %v61
    %v349 = vunpack.c.l.b16 %v62
    %v350 = vunpack.c.h.b16 %v62
    %v351 = vunpack.c.l.b16 %v63
    %v352 = vunpack.c.h.b16 %v63
    %v353 = vunpack.c.l.b16 %v64
    %v354 = vunpack.c.h.b16 %v64
    %v355 = vunpack.c.l.b16 %v65
    %v356 = vunpack.c.h.b16 %v65
    %v357 = vunpack.c.l.b16 %v66
    %v358 = vunpack.c.h.b16 %v66
    %v359 = vunpack.c.l.b16 %v67
    %v360 = vunpack.c.h.b16 %v67
    %v361 = vunpack.c.l.b16 %v68
    %v362 = vunpack.c.h.b16 %v68
    %v363 = vunpack.c.l.b16 %v69
    %v364 = vunpack.c.h.b16 %v69
    %v365 = vunpack.c.l.b16 %v70
    %v366 = vunpack.c.h.b16 %v70
    %v367 = vpack.c.b16 %v307, %v303
    %v368 = vpack.c.b16 %v308, %v304
    %v369 = vpack.c.b16 %v309, %v305
    %v370 = vpack.c.b16 %v310, %v306
    %v371 = vpack.c.b16 %v315, %v311
    %v372 = vpack.c.b16 %v316, %v312
    %v373 = vpack.c.b16 %v317, %v313
    %v374 = vpack.c.b16 %v318, %v314
    %v375 = vpack.c.b16 %v323, %v319
    %v376 = vpack.c.b16 %v324, %v320
    %v377 = vpack.c.b16 %v325, %v321
    %v378 = vpack.c.b16 %v326, %v322
    %v379 = vpack.c.b16 %v331, %v327
    %v380 = vpack.c.b16 %v332, %v328
    %v381 = vpack.c.b16 %v333, %v329
    %v382 = vpack.c.b16 %v334, %v330
    %v383 = vpack.c.b16 %v339, %v335
    %v384 = vpack.c.b16 %v340, %v336
    %v385 = vpack.c.b16 %v341, %v337
    %v386 = vpack.c.b16 %v342, %v338
    %v387 = vpack.c.b16 %v347, %v343
    %v388 = vpack.c.b16 %v348, %v344
    %v389 = vpack.c.b16 %v349, %v345
    %v390 = vpack.c.b16 %v350, %v346
    %v391 = vpack.c.b16 %v355, %v351
    %v392 = vpack.c.b16 %v356, %v352
    %v393 = vpack.c.b16 %v357, %v353
    %v394 = vpack.c.b16 %v358, %v354
    %v395 = vpack.c.b16 %v363, %v359
    %v396 = vpack.c.b16 %v364, %v360
    %v397 = vpack.c.b16 %v365, %v361
    %v398 = vpack.c.b16 %v366, %v362
    %431 = vmatprep.subr.bf16.mxu0 %v368
    %432 = vmatpush1.bf16.msra.mxu0 %v367
    %433 = vmatprep.subr.bf16.mxu0 %v372
    %434 = vmatpush1.bf16.msra.mxu0 %v371
    %435 = vmatprep.subr.bf16.mxu0 %v376
    %436 = vmatpush1.bf16.msra.mxu0 %v375
    %437 = vmatprep.subr.bf16.mxu0 %v380
    %438 = vmatpush1.bf16.msra.mxu0 %v379
    %439 = vmatprep.subr.bf16.mxu0 %v384
    %440 = vmatpush1.bf16.msra.mxu0 %v383
    %441 = vmatprep.subr.bf16.mxu0 %v388
    %442 = vmatpush1.bf16.msra.mxu0 %v387
    %443 = vmatprep.subr.bf16.mxu0 %v392
    %444 = vmatpush1.bf16.msra.mxu0 %v391
    %445 = vmatprep.subr.bf16.mxu0 %v396
    %446 = vmatpush1.bf16.msra.mxu0 %v395
    %447 = vmatprep.subr.bf16.mxu0 0
    %448 = vmatpush1.bf16.msra.mxu0 0
    %449 = vmatprep.subr.bf16.mxu0 0
    %450 = vmatpush1.bf16.msra.mxu0 0
    %451 = vmatprep.subr.bf16.mxu0 0
    %452 = vmatpush1.bf16.msra.mxu0 0
    %453 = vmatprep.subr.bf16.mxu0 0
    %454 = vmatpush1.bf16.msra.mxu0 0
    %455 = vmatprep.subr.bf16.mxu0 0
    %456 = vmatpush1.bf16.msra.mxu0 0
    %457 = vmatprep.subr.bf16.mxu0 0
    %458 = vmatpush1.bf16.msra.mxu0 0
    %459 = vmatprep.subr.bf16.mxu0 0
    %460 = vmatpush1.bf16.msra.mxu0 0
    %461 = vmatprep.subr.bf16.mxu0 0
    %462 = vmatpush1.bf16.msra.mxu0 0
    %463 = vmatprep.mubr.bf16.mxu0 0
    %464 = vmatmul.mubr.bf16.gmra.mrb[0].mxu0 0
    %v465 = vpop.f32.mrb[0].mxu0
    %v466 = vadd.f32 0.0, %v465
    %v467 = vpop.f32.mrb[0].mxu0
    %v468 = vadd.f32 0.0, %v467
    %v469 = vpop.f32.mrb[0].mxu0
    %v470 = vpop.f32.mrb[0].mxu0
    %471 = vdwg.mxu0
    %472 = vmatprep.subr.bf16.mxu0 %v370
    %473 = vmatpush1.bf16.msra.mxu0 %v369
    %474 = vmatprep.subr.bf16.mxu0 %v374
    %475 = vmatpush1.bf16.msra.mxu0 %v373
    %476 = vmatprep.subr.bf16.mxu0 %v378
    %477 = vmatpush1.bf16.msra.mxu0 %v377
    %478 = vmatprep.subr.bf16.mxu0 %v382
    %479 = vmatpush1.bf16.msra.mxu0 %v381
    %480 = vmatprep.subr.bf16.mxu0 %v386
    %481 = vmatpush1.bf16.msra.mxu0 %v385
    %482 = vmatprep.subr.bf16.mxu0 %v390
    %483 = vmatpush1.bf16.msra.mxu0 %v389
    %484 = vmatprep.subr.bf16.mxu0 %v394
    %485 = vmatpush1.bf16.msra.mxu0 %v393
    %486 = vmatprep.subr.bf16.mxu0 %v398
    %487 = vmatpush1.bf16.msra.mxu0 %v397
    %488 = vmatprep.subr.bf16.mxu0 0
    %489 = vmatpush1.bf16.msra.mxu0 0
    %490 = vmatprep.subr.bf16.mxu0 0
    %491 = vmatpush1.bf16.msra.mxu0 0
    %492 = vmatprep.subr.bf16.mxu0 0
    %493 = vmatpush1.bf16.msra.mxu0 0
    %494 = vmatprep.subr.bf16.mxu0 0
    %495 = vmatpush1.bf16.msra.mxu0 0
    %496 = vmatprep.subr.bf16.mxu0 0
    %497 = vmatpush1.bf16.msra.mxu0 0
    %498 = vmatprep.subr.bf16.mxu0 0
    %499 = vmatpush1.bf16.msra.mxu0 0
    %500 = vmatprep.subr.bf16.mxu0 0
    %501 = vmatpush1.bf16.msra.mxu0 0
    %502 = vmatprep.subr.bf16.mxu0 0
    %503 = vmatpush1.bf16.msra.mxu0 0
    %504 = vmatprep.mubr.bf16.mxu0 0
    %505 = vmatmul.mubr.bf16.gmra.mrb[0].mxu0 0
    %v506 = vpop.f32.mrb[0].mxu0
    %v507 = vadd.f32 0.0, %v506
    %v508 = vpop.f32.mrb[0].mxu0
    %v509 = vadd.f32 0.0, %v508
    %v510 = vpop.f32.mrb[0].mxu0
    %v511 = vpop.f32.mrb[0].mxu0
    %512 = vdwg.mxu0
    %v517 = vrot.slane %v466, 1
    %v518 = vrot.slane %v468, 1
    %v519 = vrot.slane %v507, 1
    %v520 = vrot.slane %v509, 1
    %v529 = vadd.f32 %v184, %v466
    %v530 = vadd.f32 %v186, %v468
    %v531 = vadd.f32 %v261, %v507
    %v532 = vadd.f32 %v263, %v509
    %v533 = vadd.f32 %v190, %v517
    %v534 = vadd.f32 %v192, %v518
    %v535 = vadd.f32 %v267, %v519
    %v536 = vadd.f32 %v269, %v520
    %v537 = vmul.f32 %v529, 0.5
    %v538 = vmul.f32 %v530, 0.5
    %v539 = vmul.f32 %v531, 0.5
    %v540 = vmul.f32 %v533, 0.5
    %v541 = vmul.f32 %v534, 0.5
    %v542 = vmul.f32 %v535, 0.5
    %v543 = vtanh.pop %v537
    %v544 = vtanh.pop %v538
    %v545 = vtanh.pop %v539
    %v546 = vtanh.pop %v540
    %v547 = vtanh.pop %v541
    %v548 = vtanh.pop %v542
    %v549 = vmul.f32 %v543, 0.5
    %v550 = vmul.f32 %v544, 0.5
    %v551 = vmul.f32 %v545, 0.5
    %v552 = vmul.f32 %v546, 0.5
    %v553 = vmul.f32 %v547, 0.5
    %v554 = vmul.f32 %v548, 0.5
    %v555 = vadd.f32 %v549, 0.5
    %v556 = vadd.f32 %v550, 0.5
    %v557 = vadd.f32 %v551, 0.5
    %v558 = vadd.f32 %v552, 0.5
    %v559 = vadd.f32 %v553, 0.5
    %v560 = vadd.f32 %v554, 0.5
    %v561 = vtanh.pop %v532
    %v562 = vtanh.pop %v536
    %v563 = vmul.f32 %v556, 0.0
    %v564 = vmul.f32 %v559, 0.0
    %v565 = vmul.f32 %v555, %v561
    %v566 = vmul.f32 %v558, %v562
    %v567 = vadd.f32 %v563, %v565
    %v568 = vadd.f32 %v564, %v566
    %v569 = vtanh.pop %v567
    %v570 = vtanh.pop %v568
    %v571 = vmul.f32 %v557, %v569
    %v572 = vmul.f32 %v560, %v570
    %v573 = vpack.c.bf16 %v571, %v571
    %v574 = vpack.c.bf16 %v572, %v572
    %v577 = vunpack.c.l.b16 %v573
    %v578 = vunpack.c.l.b16 %v574
    %v579 = vrot.slane %v578, 7
    %vm580 = vcmask 1041409
    %v581 = vsel %vm580, %v579, %v577
    %v582 = vpack.c.b16 %v581, %v581
    %584 = vmatprep.subr.bf16.mxu0 %v368
    %585 = vmatpush1.bf16.msra.mxu0 %v367
    %586 = vmatprep.subr.bf16.mxu0 %v372
    %587 = vmatpush1.bf16.msra.mxu0 %v371
    %588 = vmatprep.subr.bf16.mxu0 %v376
    %589 = vmatpush1.bf16.msra.mxu0 %v375
    %590 = vmatprep.subr.bf16.mxu0 %v380
    %591 = vmatpush1.bf16.msra.mxu0 %v379
    %592 = vmatprep.subr.bf16.mxu0 %v384
    %593 = vmatpush1.bf16.msra.mxu0 %v383
    %594 = vmatprep.subr.bf16.mxu0 %v388
    %595 = vmatpush1.bf16.msra.mxu0 %v387
    %596 = vmatprep.subr.bf16.mxu0 %v392
    %597 = vmatpush1.bf16.msra.mxu0 %v391
    %598 = vmatprep.subr.bf16.mxu0 %v396
    %599 = vmatpush1.bf16.msra.mxu0 %v395
    %600 = vmatprep.subr.bf16.mxu0 0
    %601 = vmatpush1.bf16.msra.mxu0 0
    %602 = vmatprep.subr.bf16.mxu0 0
    %603 = vmatpush1.bf16.msra.mxu0 0
    %604 = vmatprep.subr.bf16.mxu0 0
    %605 = vmatpush1.bf16.msra.mxu0 0
    %606 = vmatprep.subr.bf16.mxu0 0
    %607 = vmatpush1.bf16.msra.mxu0 0
    %608 = vmatprep.subr.bf16.mxu0 0
    %609 = vmatpush1.bf16.msra.mxu0 0
    %610 = vmatprep.subr.bf16.mxu0 0
    %611 = vmatpush1.bf16.msra.mxu0 0
    %612 = vmatprep.subr.bf16.mxu0 0
    %613 = vmatpush1.bf16.msra.mxu0 0
    %614 = vmatprep.subr.bf16.mxu0 0
    %615 = vmatpush1.bf16.msra.mxu0 0
    %616 = vmatprep.mubr.bf16.mxu0 0
    %617 = vmatmul.mubr.bf16.gmra.mrb[0].mxu0 %v582
    %v618 = vpop.f32.mrb[0].mxu0
    %v619 = vadd.f32 0.0, %v618
    %v620 = vpop.f32.mrb[0].mxu0
    %v621 = vadd.f32 0.0, %v620
    %v622 = vpop.f32.mrb[0].mxu0
    %v623 = vpop.f32.mrb[0].mxu0
    %624 = vdwg.mxu0
    %625 = vmatprep.subr.bf16.mxu0 %v370
    %626 = vmatpush1.bf16.msra.mxu0 %v369
    %627 = vmatprep.subr.bf16.mxu0 %v374
    %628 = vmatpush1.bf16.msra.mxu0 %v373
    %629 = vmatprep.subr.bf16.mxu0 %v378
    %630 = vmatpush1.bf16.msra.mxu0 %v377
    %631 = vmatprep.subr.bf16.mxu0 %v382
    %632 = vmatpush1.bf16.msra.mxu0 %v381
    %633 = vmatprep.subr.bf16.mxu0 %v386
    %634 = vmatpush1.bf16.msra.mxu0 %v385
    %635 = vmatprep.subr.bf16.mxu0 %v390
    %636 = vmatpush1.bf16.msra.mxu0 %v389
    %637 = vmatprep.subr.bf16.mxu0 %v394
    %638 = vmatpush1.bf16.msra.mxu0 %v393
    %639 = vmatprep.subr.bf16.mxu0 %v398
    %640 = vmatpush1.bf16.msra.mxu0 %v397
    %641 = vmatprep.subr.bf16.mxu0 0
    %642 = vmatpush1.bf16.msra.mxu0 0
    %643 = vmatprep.subr.bf16.mxu0 0
    %644 = vmatpush1.bf16.msra.mxu0 0
    %645 = vmatprep.subr.bf16.mxu0 0
    %646 = vmatpush1.bf16.msra.mxu0 0
    %647 = vmatprep.subr.bf16.mxu0 0
    %648 = vmatpush1.bf16.msra.mxu0 0
    %649 = vmatprep.subr.bf16.mxu0 0
    %650 = vmatpush1.bf16.msra.mxu0 0
    %651 = vmatprep.subr.bf16.mxu0 0
    %652 = vmatpush1.bf16.msra.mxu0 0
    %653 = vmatprep.subr.bf16.mxu0 0
    %654 = vmatpush1.bf16.msra.mxu0 0
    %655 = vmatprep.subr.bf16.mxu0 0
    %656 = vmatpush1.bf16.msra.mxu0 0
    %657 = vmatprep.mubr.bf16.mxu0 0
    %658 = vmatmul.mubr.bf16.gmra.mrb[0].mxu0 %v582
    %v659 = vpop.f32.mrb[0].mxu0
    %v660 = vadd.f32 0.0, %v659
    %v661 = vpop.f32.mrb[0].mxu0
    %v662 = vadd.f32 0.0, %v661
    %v663 = vpop.f32.mrb[0].mxu0
    %v664 = vpop.f32.mrb[0].mxu0
    %665 = vdwg.mxu0
    %v670 = vrot.slane %v619, 7
    %v671 = vrot.slane %v621, 7
    %v672 = vrot.slane %v660, 7
    %v673 = vrot.slane %v662, 7
    %v682 = vadd.f32 %v184, %v670
    %v683 = vadd.f32 %v186, %v671
    %v684 = vadd.f32 %v261, %v672
    %v685 = vadd.f32 %v263, %v673
    %v686 = vadd.f32 %v190, %v619
    %v687 = vadd.f32 %v192, %v621
    %v688 = vadd.f32 %v267, %v660
    %v689 = vadd.f32 %v269, %v662
    %v690 = vmul.f32 %v682, 0.5
    %v691 = vmul.f32 %v683, 0.5
    %v692 = vmul.f32 %v684, 0.5
    %v693 = vmul.f32 %v686, 0.5
    %v694 = vmul.f32 %v687, 0.5
    %v695 = vmul.f32 %v688, 0.5
    %v696 = vtanh.pop %v690
    %v697 = vtanh.pop %v691
    %v698 = vtanh.pop %v692
    %v699 = vtanh.pop %v693
    %v700 = vtanh.pop %v694
    %v701 = vtanh.pop %v695
    %v702 = vmul.f32 %v696, 0.5
    %v703 = vmul.f32 %v697, 0.5
    %v704 = vmul.f32 %v698, 0.5
    %v705 = vmul.f32 %v699, 0.5
    %v706 = vmul.f32 %v700, 0.5
    %v707 = vmul.f32 %v701, 0.5
    %v708 = vadd.f32 %v702, 0.5
    %v709 = vadd.f32 %v703, 0.5
    %v710 = vadd.f32 %v704, 0.5
    %v711 = vadd.f32 %v705, 0.5
    %v712 = vadd.f32 %v706, 0.5
    %v713 = vadd.f32 %v707, 0.5
    %v714 = vtanh.pop %v685
    %v715 = vtanh.pop %v689
    %v718 = vrot.slane %v567, 7
    %v719 = vrot.slane %v568, 7
    %v722 = vmul.f32 %v709, %v718
    %v723 = vmul.f32 %v712, %v719
    %v724 = vmul.f32 %v708, %v714
    %v725 = vmul.f32 %v711, %v715
    %v726 = vadd.f32 %v722, %v724
    %v727 = vadd.f32 %v723, %v725
    %v728 = vtanh.pop %v726
    %v729 = vtanh.pop %v727
    %v730 = vmul.f32 %v710, %v728
    %v731 = vmul.f32 %v713, %v729
    %v732 = vpack.c.bf16 %v730, %v730
    %v733 = vpack.c.bf16 %v731, %v731
    %v736 = vunpack.c.l.b16 %v732
    %v737 = vunpack.c.l.b16 %v733
    %v738 = vrot.slane %v736, 1
    %v739 = vsel %vm580, %v737, %v738
    %v740 = vpack.c.b16 %v739, %v739
    %742 = vmatprep.subr.bf16.mxu0 %v368
    %743 = vmatpush1.bf16.msra.mxu0 %v367
    %744 = vmatprep.subr.bf16.mxu0 %v372
    %745 = vmatpush1.bf16.msra.mxu0 %v371
    %746 = vmatprep.subr.bf16.mxu0 %v376
    %747 = vmatpush1.bf16.msra.mxu0 %v375
    %748 = vmatprep.subr.bf16.mxu0 %v380
    %749 = vmatpush1.bf16.msra.mxu0 %v379
    %750 = vmatprep.subr.bf16.mxu0 %v384
    %751 = vmatpush1.bf16.msra.mxu0 %v383
    %752 = vmatprep.subr.bf16.mxu0 %v388
    %753 = vmatpush1.bf16.msra.mxu0 %v387
    %754 = vmatprep.subr.bf16.mxu0 %v392
    %755 = vmatpush1.bf16.msra.mxu0 %v391
    %756 = vmatprep.subr.bf16.mxu0 %v396
    %757 = vmatpush1.bf16.msra.mxu0 %v395
    %758 = vmatprep.subr.bf16.mxu0 0
    %759 = vmatpush1.bf16.msra.mxu0 0
    %760 = vmatprep.subr.bf16.mxu0 0
    %761 = vmatpush1.bf16.msra.mxu0 0
    %762 = vmatprep.subr.bf16.mxu0 0
    %763 = vmatpush1.bf16.msra.mxu0 0
    %764 = vmatprep.subr.bf16.mxu0 0
    %765 = vmatpush1.bf16.msra.mxu0 0
    %766 = vmatprep.subr.bf16.mxu0 0
    %767 = vmatpush1.bf16.msra.mxu0 0
    %768 = vmatprep.subr.bf16.mxu0 0
    %769 = vmatpush1.bf16.msra.mxu0 0
    %770 = vmatprep.subr.bf16.mxu0 0
    %771 = vmatpush1.bf16.msra.mxu0 0
    %772 = vmatprep.subr.bf16.mxu0 0
    %773 = vmatpush1.bf16.msra.mxu0 0
    %774 = vmatprep.mubr.bf16.mxu0 0
    %775 = vmatmul.mubr.bf16.gmra.mrb[0].mxu0 %v740
    %v776 = vpop.f32.mrb[0].mxu0
    %v777 = vadd.f32 0.0, %v776
    %v778 = vpop.f32.mrb[0].mxu0
    %v779 = vadd.f32 0.0, %v778
    %v780 = vpop.f32.mrb[0].mxu0
    %v781 = vpop.f32.mrb[0].mxu0
    %782 = vdwg.mxu0
    %783 = vmatprep.subr.bf16.mxu0 %v370
    %784 = vmatpush1.bf16.msra.mxu0 %v369
    %785 = vmatprep.subr.bf16.mxu0 %v374
    %786 = vmatpush1.bf16.msra.mxu0 %v373
    %787 = vmatprep.subr.bf16.mxu0 %v378
    %788 = vmatpush1.bf16.msra.mxu0 %v377
    %789 = vmatprep.subr.bf16.mxu0 %v382
    %790 = vmatpush1.bf16.msra.mxu0 %v381
    %791 = vmatprep.subr.bf16.mxu0 %v386
    %792 = vmatpush1.bf16.msra.mxu0 %v385
    %793 = vmatprep.subr.bf16.mxu0 %v390
    %794 = vmatpush1.bf16.msra.mxu0 %v389
    %795 = vmatprep.subr.bf16.mxu0 %v394
    %796 = vmatpush1.bf16.msra.mxu0 %v393
    %797 = vmatprep.subr.bf16.mxu0 %v398
    %798 = vmatpush1.bf16.msra.mxu0 %v397
    %799 = vmatprep.subr.bf16.mxu0 0
    %800 = vmatpush1.bf16.msra.mxu0 0
    %801 = vmatprep.subr.bf16.mxu0 0
    %802 = vmatpush1.bf16.msra.mxu0 0
    %803 = vmatprep.subr.bf16.mxu0 0
    %804 = vmatpush1.bf16.msra.mxu0 0
    %805 = vmatprep.subr.bf16.mxu0 0
    %806 = vmatpush1.bf16.msra.mxu0 0
    %807 = vmatprep.subr.bf16.mxu0 0
    %808 = vmatpush1.bf16.msra.mxu0 0
    %809 = vmatprep.subr.bf16.mxu0 0
    %810 = vmatpush1.bf16.msra.mxu0 0
    %811 = vmatprep.subr.bf16.mxu0 0
    %812 = vmatpush1.bf16.msra.mxu0 0
    %813 = vmatprep.subr.bf16.mxu0 0
    %814 = vmatpush1.bf16.msra.mxu0 0
    %815 = vmatprep.mubr.bf16.mxu0 0
    %816 = vmatmul.mubr.bf16.gmra.mrb[0].mxu0 %v740
    %v817 = vpop.f32.mrb[0].mxu0
    %v818 = vadd.f32 0.0, %v817
    %v819 = vpop.f32.mrb[0].mxu0
    %v820 = vadd.f32 0.0, %v819
    %v821 = vpop.f32.mrb[0].mxu0
    %v822 = vpop.f32.mrb[0].mxu0
    %823 = vdwg.mxu0
    %v828 = vrot.slane %v777, 6
    %v829 = vrot.slane %v779, 6
    %v830 = vrot.slane %v818, 6
    %v831 = vrot.slane %v820, 6
    %v832 = vrot.slane %v777, 7
    %v833 = vrot.slane %v779, 7
    %v834 = vrot.slane %v818, 7
    %v835 = vrot.slane %v820, 7
    %v844 = vadd.f32 %v184, %v828
    %v845 = vadd.f32 %v186, %v829
    %v846 = vadd.f32 %v261, %v830
    %v847 = vadd.f32 %v263, %v831
    %v848 = vadd.f32 %v190, %v832
    %v849 = vadd.f32 %v192, %v833
    %v850 = vadd.f32 %v267, %v834
    %v851 = vadd.f32 %v269, %v835
    %v852 = vmul.f32 %v844, 0.5
    %v853 = vmul.f32 %v845, 0.5
    %v854 = vmul.f32 %v846, 0.5
    %v855 = vmul.f32 %v848, 0.5
    %v856 = vmul.f32 %v849, 0.5
    %v857 = vmul.f32 %v850, 0.5
    %v858 = vtanh.pop %v852
    %v859 = vtanh.pop %v853
    %v860 = vtanh.pop %v854
    %v861 = vtanh.pop %v855
    %v862 = vtanh.pop %v856
    %v863 = vtanh.pop %v857
    %v864 = vmul.f32 %v858, 0.5
    %v865 = vmul.f32 %v859, 0.5
    %v866 = vmul.f32 %v860, 0.5
    %v867 = vmul.f32 %v861, 0.5
    %v868 = vmul.f32 %v862, 0.5
    %v869 = vmul.f32 %v863, 0.5
    %v870 = vadd.f32 %v864, 0.5
    %v871 = vadd.f32 %v865, 0.5
    %v872 = vadd.f32 %v866, 0.5
    %v873 = vadd.f32 %v867, 0.5
    %v874 = vadd.f32 %v868, 0.5
    %v875 = vadd.f32 %v869, 0.5
    %v876 = vtanh.pop %v847
    %v877 = vtanh.pop %v851
    %v880 = vrot.slane %v726, 7
    %v881 = vrot.slane %v727, 7
    %v884 = vmul.f32 %v871, %v880
    %v885 = vmul.f32 %v874, %v881
    %v886 = vmul.f32 %v870, %v876
    %v887 = vmul.f32 %v873, %v877
    %v888 = vadd.f32 %v884, %v886
    %v889 = vadd.f32 %v885, %v887
    %v890 = vtanh.pop %v888
    %v891 = vtanh.pop %v889
    %v892 = vmul.f32 %v872, %v890
    %v893 = vmul.f32 %v875, %v891
    %v894 = vpack.c.bf16 %v892, %v892
    %v895 = vpack.c.bf16 %v893, %v893
    %v898 = vunpack.c.l.b16 %v894
    %v899 = vunpack.c.l.b16 %v895
    %v900 = vrot.slane %v898, 2
    %v901 = vrot.slane %v899, 1
    %v902 = vsel %vm580, %v901, %v900
    %v903 = vpack.c.b16 %v902, %v902
    %905 = vmatprep.subr.bf16.mxu0 %v368
    %906 = vmatpush1.bf16.msra.mxu0 %v367
    %907 = vmatprep.subr.bf16.mxu0 %v372
    %908 = vmatpush1.bf16.msra.mxu0 %v371
    %909 = vmatprep.subr.bf16.mxu0 %v376
    %910 = vmatpush1.bf16.msra.mxu0 %v375
    %911 = vmatprep.subr.bf16.mxu0 %v380
    %912 = vmatpush1.bf16.msra.mxu0 %v379
    %913 = vmatprep.subr.bf16.mxu0 %v384
    %914 = vmatpush1.bf16.msra.mxu0 %v383
    %915 = vmatprep.subr.bf16.mxu0 %v388
    %916 = vmatpush1.bf16.msra.mxu0 %v387
    %917 = vmatprep.subr.bf16.mxu0 %v392
    %918 = vmatpush1.bf16.msra.mxu0 %v391
    %919 = vmatprep.subr.bf16.mxu0 %v396
    %920 = vmatpush1.bf16.msra.mxu0 %v395
    %921 = vmatprep.subr.bf16.mxu0 0
    %922 = vmatpush1.bf16.msra.mxu0 0
    %923 = vmatprep.subr.bf16.mxu0 0
    %924 = vmatpush1.bf16.msra.mxu0 0
    %925 = vmatprep.subr.bf16.mxu0 0
    %926 = vmatpush1.bf16.msra.mxu0 0
    %927 = vmatprep.subr.bf16.mxu0 0
    %928 = vmatpush1.bf16.msra.mxu0 0
    %929 = vmatprep.subr.bf16.mxu0 0
    %930 = vmatpush1.bf16.msra.mxu0 0
    %931 = vmatprep.subr.bf16.mxu0 0
    %932 = vmatpush1.bf16.msra.mxu0 0
    %933 = vmatprep.subr.bf16.mxu0 0
    %934 = vmatpush1.bf16.msra.mxu0 0
    %935 = vmatprep.subr.bf16.mxu0 0
    %936 = vmatpush1.bf16.msra.mxu0 0
    %937 = vmatprep.mubr.bf16.mxu0 0
    %938 = vmatmul.mubr.bf16.gmra.mrb[0].mxu0 %v903
    %v939 = vpop.f32.mrb[0].mxu0
    %v940 = vadd.f32 0.0, %v939
    %v941 = vpop.f32.mrb[0].mxu0
    %v942 = vadd.f32 0.0, %v941
    %v943 = vpop.f32.mrb[0].mxu0
    %v944 = vpop.f32.mrb[0].mxu0
    %945 = vdwg.mxu0
    %946 = vmatprep.subr.bf16.mxu0 %v370
    %947 = vmatpush1.bf16.msra.mxu0 %v369
    %948 = vmatprep.subr.bf16.mxu0 %v374
    %949 = vmatpush1.bf16.msra.mxu0 %v373
    %950 = vmatprep.subr.bf16.mxu0 %v378
    %951 = vmatpush1.bf16.msra.mxu0 %v377
    %952 = vmatprep.subr.bf16.mxu0 %v382
    %953 = vmatpush1.bf16.msra.mxu0 %v381
    %954 = vmatprep.subr.bf16.mxu0 %v386
    %955 = vmatpush1.bf16.msra.mxu0 %v385
    %956 = vmatprep.subr.bf16.mxu0 %v390
    %957 = vmatpush1.bf16.msra.mxu0 %v389
    %958 = vmatprep.subr.bf16.mxu0 %v394
    %959 = vmatpush1.bf16.msra.mxu0 %v393
    %960 = vmatprep.subr.bf16.mxu0 %v398
    %961 = vmatpush1.bf16.msra.mxu0 %v397
    %962 = vmatprep.subr.bf16.mxu0 0
    %963 = vmatpush1.bf16.msra.mxu0 0
    %964 = vmatprep.subr.bf16.mxu0 0
    %965 = vmatpush1.bf16.msra.mxu0 0
    %966 = vmatprep.subr.bf16.mxu0 0
    %967 = vmatpush1.bf16.msra.mxu0 0
    %968 = vmatprep.subr.bf16.mxu0 0
    %969 = vmatpush1.bf16.msra.mxu0 0
    %970 = vmatprep.subr.bf16.mxu0 0
    %971 = vmatpush1.bf16.msra.mxu0 0
    %972 = vmatprep.subr.bf16.mxu0 0
    %973 = vmatpush1.bf16.msra.mxu0 0
    %974 = vmatprep.subr.bf16.mxu0 0
    %975 = vmatpush1.bf16.msra.mxu0 0
    %976 = vmatprep.subr.bf16.mxu0 0
    %977 = vmatpush1.bf16.msra.mxu0 0
    %978 = vmatprep.mubr.bf16.mxu0 0
    %979 = vmatmul.mubr.bf16.gmra.mrb[0].mxu0 %v903
    %v980 = vpop.f32.mrb[0].mxu0
    %v981 = vadd.f32 0.0, %v980
    %v982 = vpop.f32.mrb[0].mxu0
    %v983 = vadd.f32 0.0, %v982
    %v984 = vpop.f32.mrb[0].mxu0
    %v985 = vpop.f32.mrb[0].mxu0
    %986 = vdwg.mxu0
    %v991 = vrot.slane %v940, 5
    %v992 = vrot.slane %v942, 5
    %v993 = vrot.slane %v981, 5
    %v994 = vrot.slane %v983, 5
    %v995 = vrot.slane %v940, 6
    %v996 = vrot.slane %v942, 6
    %v997 = vrot.slane %v981, 6
    %v998 = vrot.slane %v983, 6
    %v1007 = vadd.f32 %v184, %v991
    %v1008 = vadd.f32 %v186, %v992
    %v1009 = vadd.f32 %v261, %v993
    %v1010 = vadd.f32 %v263, %v994
    %v1011 = vadd.f32 %v190, %v995
    %v1012 = vadd.f32 %v192, %v996
    %v1013 = vadd.f32 %v267, %v997
    %v1014 = vadd.f32 %v269, %v998
    %v1015 = vmul.f32 %v1007, 0.5
    %v1016 = vmul.f32 %v1008, 0.5
    %v1017 = vmul.f32 %v1009, 0.5
    %v1018 = vmul.f32 %v1011, 0.5
    %v1019 = vmul.f32 %v1012, 0.5
    %v1020 = vmul.f32 %v1013, 0.5
    %v1021 = vtanh.pop %v1015
    %v1022 = vtanh.pop %v1016
    %v1023 = vtanh.pop %v1017
    %v1024 = vtanh.pop %v1018
    %v1025 = vtanh.pop %v1019
    %v1026 = vtanh.pop %v1020
    %v1027 = vmul.f32 %v1021, 0.5
    %v1028 = vmul.f32 %v1022, 0.5
    %v1029 = vmul.f32 %v1023, 0.5
    %v1030 = vmul.f32 %v1024, 0.5
    %v1031 = vmul.f32 %v1025, 0.5
    %v1032 = vmul.f32 %v1026, 0.5
    %v1033 = vadd.f32 %v1027, 0.5
    %v1034 = vadd.f32 %v1028, 0.5
    %v1035 = vadd.f32 %v1029, 0.5
    %v1036 = vadd.f32 %v1030, 0.5
    %v1037 = vadd.f32 %v1031, 0.5
    %v1038 = vadd.f32 %v1032, 0.5
    %v1039 = vtanh.pop %v1010
    %v1040 = vtanh.pop %v1014
    %v1043 = vrot.slane %v888, 7
    %v1044 = vrot.slane %v889, 7
    %v1047 = vmul.f32 %v1034, %v1043
    %v1048 = vmul.f32 %v1037, %v1044
    %v1049 = vmul.f32 %v1033, %v1039
    %v1050 = vmul.f32 %v1036, %v1040
    %v1051 = vadd.f32 %v1047, %v1049
    %v1052 = vadd.f32 %v1048, %v1050
    %v1053 = vtanh.pop %v1051
    %v1054 = vtanh.pop %v1052
    %v1055 = vmul.f32 %v1035, %v1053
    %v1056 = vmul.f32 %v1038, %v1054
    %v1057 = vpack.c.bf16 %v1055, %v1055
    %v1058 = vpack.c.bf16 %v1056, %v1056
    %v1061 = vunpack.c.l.b16 %v1057
    %v1062 = vunpack.c.l.b16 %v1058
    %v1063 = vrot.slane %v1061, 3
    %v1064 = vrot.slane %v1062, 2
    %v1065 = vsel %vm580, %v1064, %v1063
    %v1066 = vpack.c.b16 %v1065, %v1065
    %1068 = vmatprep.subr.bf16.mxu0 %v368
    %1069 = vmatpush1.bf16.msra.mxu0 %v367
    %1070 = vmatprep.subr.bf16.mxu0 %v372
    %1071 = vmatpush1.bf16.msra.mxu0 %v371
    %1072 = vmatprep.subr.bf16.mxu0 %v376
    %1073 = vmatpush1.bf16.msra.mxu0 %v375
    %1074 = vmatprep.subr.bf16.mxu0 %v380
    %1075 = vmatpush1.bf16.msra.mxu0 %v379
    %1076 = vmatprep.subr.bf16.mxu0 %v384
    %1077 = vmatpush1.bf16.msra.mxu0 %v383
    %1078 = vmatprep.subr.bf16.mxu0 %v388
    %1079 = vmatpush1.bf16.msra.mxu0 %v387
    %1080 = vmatprep.subr.bf16.mxu0 %v392
    %1081 = vmatpush1.bf16.msra.mxu0 %v391
    %1082 = vmatprep.subr.bf16.mxu0 %v396
    %1083 = vmatpush1.bf16.msra.mxu0 %v395
    %1084 = vmatprep.subr.bf16.mxu0 0
    %1085 = vmatpush1.bf16.msra.mxu0 0
    %1086 = vmatprep.subr.bf16.mxu0 0
    %1087 = vmatpush1.bf16.msra.mxu0 0
    %1088 = vmatprep.subr.bf16.mxu0 0
    %1089 = vmatpush1.bf16.msra.mxu0 0
    %1090 = vmatprep.subr.bf16.mxu0 0
    %1091 = vmatpush1.bf16.msra.mxu0 0
    %1092 = vmatprep.subr.bf16.mxu0 0
    %1093 = vmatpush1.bf16.msra.mxu0 0
    %1094 = vmatprep.subr.bf16.mxu0 0
    %1095 = vmatpush1.bf16.msra.mxu0 0
    %1096 = vmatprep.subr.bf16.mxu0 0
    %1097 = vmatpush1.bf16.msra.mxu0 0
    %1098 = vmatprep.subr.bf16.mxu0 0
    %1099 = vmatpush1.bf16.msra.mxu0 0
    %1100 = vmatprep.mubr.bf16.mxu0 0
    %1101 = vmatmul.mubr.bf16.gmra.mrb[0].mxu0 %v1066
    %v1102 = vpop.f32.mrb[0].mxu0
    %v1103 = vadd.f32 0.0, %v1102
    %v1104 = vpop.f32.mrb[0].mxu0
    %v1105 = vadd.f32 0.0, %v1104
    %v1106 = vpop.f32.mrb[0].mxu0
    %v1107 = vpop.f32.mrb[0].mxu0
    %1108 = vdwg.mxu0
    %1109 = vmatprep.subr.bf16.mxu0 %v370
    %1110 = vmatpush1.bf16.msra.mxu0 %v369
    %1111 = vmatprep.subr.bf16.mxu0 %v374
    %1112 = vmatpush1.bf16.msra.mxu0 %v373
    %1113 = vmatprep.subr.bf16.mxu0 %v378
    %1114 = vmatpush1.bf16.msra.mxu0 %v377
    %1115 = vmatprep.subr.bf16.mxu0 %v382
    %1116 = vmatpush1.bf16.msra.mxu0 %v381
    %1117 = vmatprep.subr.bf16.mxu0 %v386
    %1118 = vmatpush1.bf16.msra.mxu0 %v385
    %1119 = vmatprep.subr.bf16.mxu0 %v390
    %1120 = vmatpush1.bf16.msra.mxu0 %v389
    %1121 = vmatprep.subr.bf16.mxu0 %v394
    %1122 = vmatpush1.bf16.msra.mxu0 %v393
    %1123 = vmatprep.subr.bf16.mxu0 %v398
    %1124 = vmatpush1.bf16.msra.mxu0 %v397
    %1125 = vmatprep.subr.bf16.mxu0 0
    %1126 = vmatpush1.bf16.msra.mxu0 0
    %1127 = vmatprep.subr.bf16.mxu0 0
    %1128 = vmatpush1.bf16.msra.mxu0 0
    %1129 = vmatprep.subr.bf16.mxu0 0
    %1130 = vmatpush1.bf16.msra.mxu0 0
    %1131 = vmatprep.subr.bf16.mxu0 0
    %1132 = vmatpush1.bf16.msra.mxu0 0
    %1133 = vmatprep.subr.bf16.mxu0 0
    %1134 = vmatpush1.bf16.msra.mxu0 0
    %1135 = vmatprep.subr.bf16.mxu0 0
    %1136 = vmatpush1.bf16.msra.mxu0 0
    %1137 = vmatprep.subr.bf16.mxu0 0
    %1138 = vmatpush1.bf16.msra.mxu0 0
    %1139 = vmatprep.subr.bf16.mxu0 0
    %1140 = vmatpush1.bf16.msra.mxu0 0
    %1141 = vmatprep.mubr.bf16.mxu0 0
    %1142 = vmatmul.mubr.bf16.gmra.mrb[0].mxu0 %v1066
    %v1143 = vpop.f32.mrb[0].mxu0
    %v1144 = vadd.f32 0.0, %v1143
    %v1145 = vpop.f32.mrb[0].mxu0
    %v1146 = vadd.f32 0.0, %v1145
    %v1147 = vpop.f32.mrb[0].mxu0
    %v1148 = vpop.f32.mrb[0].mxu0
    %1149 = vdwg.mxu0
    %v1154 = vrot.slane %v1103, 4
    %v1155 = vrot.slane %v1105, 4
    %v1156 = vrot.slane %v1144, 4
    %v1157 = vrot.slane %v1146, 4
    %v1158 = vrot.slane %v1103, 5
    %v1159 = vrot.slane %v1105, 5
    %v1160 = vrot.slane %v1144, 5
    %v1161 = vrot.slane %v1146, 5
    %v1170 = vadd.f32 %v184, %v1154
    %v1171 = vadd.f32 %v186, %v1155
    %v1172 = vadd.f32 %v261, %v1156
    %v1173 = vadd.f32 %v263, %v1157
    %v1174 = vadd.f32 %v190, %v1158
    %v1175 = vadd.f32 %v192, %v1159
    %v1176 = vadd.f32 %v267, %v1160
    %v1177 = vadd.f32 %v269, %v1161
    %v1178 = vmul.f32 %v1170, 0.5
    %v1179 = vmul.f32 %v1171, 0.5
    %v1180 = vmul.f32 %v1172, 0.5
    %v1181 = vmul.f32 %v1174, 0.5
    %v1182 = vmul.f32 %v1175, 0.5
    %v1183 = vmul.f32 %v1176, 0.5
    %v1184 = vtanh.pop %v1178
    %v1185 = vtanh.pop %v1179
    %v1186 = vtanh.pop %v1180
    %v1187 = vtanh.pop %v1181
    %v1188 = vtanh.pop %v1182
    %v1189 = vtanh.pop %v1183
    %v1190 = vmul.f32 %v1184, 0.5
    %v1191 = vmul.f32 %v1185, 0.5
    %v1192 = vmul.f32 %v1186, 0.5
    %v1193 = vmul.f32 %v1187, 0.5
    %v1194 = vmul.f32 %v1188, 0.5
    %v1195 = vmul.f32 %v1189, 0.5
    %v1196 = vadd.f32 %v1190, 0.5
    %v1197 = vadd.f32 %v1191, 0.5
    %v1198 = vadd.f32 %v1192, 0.5
    %v1199 = vadd.f32 %v1193, 0.5
    %v1200 = vadd.f32 %v1194, 0.5
    %v1201 = vadd.f32 %v1195, 0.5
    %v1202 = vtanh.pop %v1173
    %v1203 = vtanh.pop %v1177
    %v1206 = vrot.slane %v1051, 7
    %v1207 = vrot.slane %v1052, 7
    %v1210 = vmul.f32 %v1197, %v1206
    %v1211 = vmul.f32 %v1200, %v1207
    %v1212 = vmul.f32 %v1196, %v1202
    %v1213 = vmul.f32 %v1199, %v1203
    %v1214 = vadd.f32 %v1210, %v1212
    %v1215 = vadd.f32 %v1211, %v1213
    %v1216 = vtanh.pop %v1214
    %v1217 = vtanh.pop %v1215
    %v1218 = vmul.f32 %v1198, %v1216
    %v1219 = vmul.f32 %v1201, %v1217
    %v1220 = vpack.c.bf16 %v1218, %v1218
    %v1221 = vpack.c.bf16 %v1219, %v1219
    %v1224 = vunpack.c.l.b16 %v1220
    %v1225 = vunpack.c.l.b16 %v1221
    %v1226 = vrot.slane %v1224, 4
    %v1227 = vrot.slane %v1225, 3
    %v1228 = vsel %vm580, %v1227, %v1226
    %v1229 = vpack.c.b16 %v1228, %v1228
    %1231 = vmatprep.subr.bf16.mxu0 %v368
    %1232 = vmatpush1.bf16.msra.mxu0 %v367
    %1233 = vmatprep.subr.bf16.mxu0 %v372
    %1234 = vmatpush1.bf16.msra.mxu0 %v371
    %1235 = vmatprep.subr.bf16.mxu0 %v376
    %1236 = vmatpush1.bf16.msra.mxu0 %v375
    %1237 = vmatprep.subr.bf16.mxu0 %v380
    %1238 = vmatpush1.bf16.msra.mxu0 %v379
    %1239 = vmatprep.subr.bf16.mxu0 %v384
    %1240 = vmatpush1.bf16.msra.mxu0 %v383
    %1241 = vmatprep.subr.bf16.mxu0 %v388
    %1242 = vmatpush1.bf16.msra.mxu0 %v387
    %1243 = vmatprep.subr.bf16.mxu0 %v392
    %1244 = vmatpush1.bf16.msra.mxu0 %v391
    %1245 = vmatprep.subr.bf16.mxu0 %v396
    %1246 = vmatpush1.bf16.msra.mxu0 %v395
    %1247 = vmatprep.subr.bf16.mxu0 0
    %1248 = vmatpush1.bf16.msra.mxu0 0
    %1249 = vmatprep.subr.bf16.mxu0 0
    %1250 = vmatpush1.bf16.msra.mxu0 0
    %1251 = vmatprep.subr.bf16.mxu0 0
    %1252 = vmatpush1.bf16.msra.mxu0 0
    %1253 = vmatprep.subr.bf16.mxu0 0
    %1254 = vmatpush1.bf16.msra.mxu0 0
    %1255 = vmatprep.subr.bf16.mxu0 0
    %1256 = vmatpush1.bf16.msra.mxu0 0
    %1257 = vmatprep.subr.bf16.mxu0 0
    %1258 = vmatpush1.bf16.msra.mxu0 0
    %1259 = vmatprep.subr.bf16.mxu0 0
    %1260 = vmatpush1.bf16.msra.mxu0 0
    %1261 = vmatprep.subr.bf16.mxu0 0
    %1262 = vmatpush1.bf16.msra.mxu0 0
    %1263 = vmatprep.mubr.bf16.mxu0 0
    %1264 = vmatmul.mubr.bf16.gmra.mrb[0].mxu0 %v1229
    %v1265 = vpop.f32.mrb[0].mxu0
    %v1266 = vadd.f32 0.0, %v1265
    %v1267 = vpop.f32.mrb[0].mxu0
    %v1268 = vadd.f32 0.0, %v1267
    %v1269 = vpop.f32.mrb[0].mxu0
    %v1270 = vpop.f32.mrb[0].mxu0
    %1271 = vdwg.mxu0
    %1272 = vmatprep.subr.bf16.mxu0 %v370
    %1273 = vmatpush1.bf16.msra.mxu0 %v369
    %1274 = vmatprep.subr.bf16.mxu0 %v374
    %1275 = vmatpush1.bf16.msra.mxu0 %v373
    %1276 = vmatprep.subr.bf16.mxu0 %v378
    %1277 = vmatpush1.bf16.msra.mxu0 %v377
    %1278 = vmatprep.subr.bf16.mxu0 %v382
    %1279 = vmatpush1.bf16.msra.mxu0 %v381
    %1280 = vmatprep.subr.bf16.mxu0 %v386
    %1281 = vmatpush1.bf16.msra.mxu0 %v385
    %1282 = vmatprep.subr.bf16.mxu0 %v390
    %1283 = vmatpush1.bf16.msra.mxu0 %v389
    %1284 = vmatprep.subr.bf16.mxu0 %v394
    %1285 = vmatpush1.bf16.msra.mxu0 %v393
    %1286 = vmatprep.subr.bf16.mxu0 %v398
    %1287 = vmatpush1.bf16.msra.mxu0 %v397
    %1288 = vmatprep.subr.bf16.mxu0 0
    %1289 = vmatpush1.bf16.msra.mxu0 0
    %1290 = vmatprep.subr.bf16.mxu0 0
    %1291 = vmatpush1.bf16.msra.mxu0 0
    %1292 = vmatprep.subr.bf16.mxu0 0
    %1293 = vmatpush1.bf16.msra.mxu0 0
    %1294 = vmatprep.subr.bf16.mxu0 0
    %1295 = vmatpush1.bf16.msra.mxu0 0
    %1296 = vmatprep.subr.bf16.mxu0 0
    %1297 = vmatpush1.bf16.msra.mxu0 0
    %1298 = vmatprep.subr.bf16.mxu0 0
    %1299 = vmatpush1.bf16.msra.mxu0 0
    %1300 = vmatprep.subr.bf16.mxu0 0
    %1301 = vmatpush1.bf16.msra.mxu0 0
    %1302 = vmatprep.subr.bf16.mxu0 0
    %1303 = vmatpush1.bf16.msra.mxu0 0
    %1304 = vmatprep.mubr.bf16.mxu0 0
    %1305 = vmatmul.mubr.bf16.gmra.mrb[0].mxu0 %v1229
    %v1306 = vpop.f32.mrb[0].mxu0
    %v1307 = vadd.f32 0.0, %v1306
    %v1308 = vpop.f32.mrb[0].mxu0
    %v1309 = vadd.f32 0.0, %v1308
    %v1310 = vpop.f32.mrb[0].mxu0
    %v1311 = vpop.f32.mrb[0].mxu0
    %1312 = vdwg.mxu0
    %v1317 = vrot.slane %v1266, 3
    %v1318 = vrot.slane %v1268, 3
    %v1319 = vrot.slane %v1307, 3
    %v1320 = vrot.slane %v1309, 3
    %v1321 = vrot.slane %v1266, 4
    %v1322 = vrot.slane %v1268, 4
    %v1323 = vrot.slane %v1307, 4
    %v1324 = vrot.slane %v1309, 4
    %v1333 = vadd.f32 %v184, %v1317
    %v1334 = vadd.f32 %v186, %v1318
    %v1335 = vadd.f32 %v261, %v1319
    %v1336 = vadd.f32 %v263, %v1320
    %v1337 = vadd.f32 %v190, %v1321
    %v1338 = vadd.f32 %v192, %v1322
    %v1339 = vadd.f32 %v267, %v1323
    %v1340 = vadd.f32 %v269, %v1324
    %v1341 = vmul.f32 %v1333, 0.5
    %v1342 = vmul.f32 %v1334, 0.5
    %v1343 = vmul.f32 %v1335, 0.5
    %v1344 = vmul.f32 %v1337, 0.5
    %v1345 = vmul.f32 %v1338, 0.5
    %v1346 = vmul.f32 %v1339, 0.5
    %v1347 = vtanh.pop %v1341
    %v1348 = vtanh.pop %v1342
    %v1349 = vtanh.pop %v1343
    %v1350 = vtanh.pop %v1344
    %v1351 = vtanh.pop %v1345
    %v1352 = vtanh.pop %v1346
    %v1353 = vmul.f32 %v1347, 0.5
    %v1354 = vmul.f32 %v1348, 0.5
    %v1355 = vmul.f32 %v1349, 0.5
    %v1356 = vmul.f32 %v1350, 0.5
    %v1357 = vmul.f32 %v1351, 0.5
    %v1358 = vmul.f32 %v1352, 0.5
    %v1359 = vadd.f32 %v1353, 0.5
    %v1360 = vadd.f32 %v1354, 0.5
    %v1361 = vadd.f32 %v1355, 0.5
    %v1362 = vadd.f32 %v1356, 0.5
    %v1363 = vadd.f32 %v1357, 0.5
    %v1364 = vadd.f32 %v1358, 0.5
    %v1365 = vtanh.pop %v1336
    %v1366 = vtanh.pop %v1340
    %v1369 = vrot.slane %v1214, 7
    %v1370 = vrot.slane %v1215, 7
    %v1373 = vmul.f32 %v1360, %v1369
    %v1374 = vmul.f32 %v1363, %v1370
    %v1375 = vmul.f32 %v1359, %v1365
    %v1376 = vmul.f32 %v1362, %v1366
    %v1377 = vadd.f32 %v1373, %v1375
    %v1378 = vadd.f32 %v1374, %v1376
    %v1379 = vtanh.pop %v1377
    %v1380 = vtanh.pop %v1378
    %v1381 = vmul.f32 %v1361, %v1379
    %v1382 = vmul.f32 %v1364, %v1380
    %v1383 = vpack.c.bf16 %v1381, %v1381
    %v1384 = vpack.c.bf16 %v1382, %v1382
    %v1387 = vunpack.c.l.b16 %v1383
    %v1388 = vunpack.c.l.b16 %v1384
    %v1389 = vrot.slane %v1387, 5
    %v1390 = vrot.slane %v1388, 4
    %v1391 = vsel %vm580, %v1390, %v1389
    %v1392 = vpack.c.b16 %v1391, %v1391
    %1394 = vmatprep.subr.bf16.mxu0 %v368
    %1395 = vmatpush1.bf16.msra.mxu0 %v367
    %1396 = vmatprep.subr.bf16.mxu0 %v372
    %1397 = vmatpush1.bf16.msra.mxu0 %v371
    %1398 = vmatprep.subr.bf16.mxu0 %v376
    %1399 = vmatpush1.bf16.msra.mxu0 %v375
    %1400 = vmatprep.subr.bf16.mxu0 %v380
    %1401 = vmatpush1.bf16.msra.mxu0 %v379
    %1402 = vmatprep.subr.bf16.mxu0 %v384
    %1403 = vmatpush1.bf16.msra.mxu0 %v383
    %1404 = vmatprep.subr.bf16.mxu0 %v388
    %1405 = vmatpush1.bf16.msra.mxu0 %v387
    %1406 = vmatprep.subr.bf16.mxu0 %v392
    %1407 = vmatpush1.bf16.msra.mxu0 %v391
    %1408 = vmatprep.subr.bf16.mxu0 %v396
    %1409 = vmatpush1.bf16.msra.mxu0 %v395
    %1410 = vmatprep.subr.bf16.mxu0 0
    %1411 = vmatpush1.bf16.msra.mxu0 0
    %1412 = vmatprep.subr.bf16.mxu0 0
    %1413 = vmatpush1.bf16.msra.mxu0 0
    %1414 = vmatprep.subr.bf16.mxu0 0
    %1415 = vmatpush1.bf16.msra.mxu0 0
    %1416 = vmatprep.subr.bf16.mxu0 0
    %1417 = vmatpush1.bf16.msra.mxu0 0
    %1418 = vmatprep.subr.bf16.mxu0 0
    %1419 = vmatpush1.bf16.msra.mxu0 0
    %1420 = vmatprep.subr.bf16.mxu0 0
    %1421 = vmatpush1.bf16.msra.mxu0 0
    %1422 = vmatprep.subr.bf16.mxu0 0
    %1423 = vmatpush1.bf16.msra.mxu0 0
    %1424 = vmatprep.subr.bf16.mxu0 0
    %1425 = vmatpush1.bf16.msra.mxu0 0
    %1426 = vmatprep.mubr.bf16.mxu0 0
    %1427 = vmatmul.mubr.bf16.gmra.mrb[0].mxu0 %v1392
    %v1428 = vpop.f32.mrb[0].mxu0
    %v1429 = vadd.f32 0.0, %v1428
    %v1430 = vpop.f32.mrb[0].mxu0
    %v1431 = vadd.f32 0.0, %v1430
    %v1432 = vpop.f32.mrb[0].mxu0
    %v1433 = vpop.f32.mrb[0].mxu0
    %1434 = vdwg.mxu0
    %1435 = vmatprep.subr.bf16.mxu0 %v370
    %1436 = vmatpush1.bf16.msra.mxu0 %v369
    %1437 = vmatprep.subr.bf16.mxu0 %v374
    %1438 = vmatpush1.bf16.msra.mxu0 %v373
    %1439 = vmatprep.subr.bf16.mxu0 %v378
    %1440 = vmatpush1.bf16.msra.mxu0 %v377
    %1441 = vmatprep.subr.bf16.mxu0 %v382
    %1442 = vmatpush1.bf16.msra.mxu0 %v381
    %1443 = vmatprep.subr.bf16.mxu0 %v386
    %1444 = vmatpush1.bf16.msra.mxu0 %v385
    %1445 = vmatprep.subr.bf16.mxu0 %v390
    %1446 = vmatpush1.bf16.msra.mxu0 %v389
    %1447 = vmatprep.subr.bf16.mxu0 %v394
    %1448 = vmatpush1.bf16.msra.mxu0 %v393
    %1449 = vmatprep.subr.bf16.mxu0 %v398
    %1450 = vmatpush1.bf16.msra.mxu0 %v397
    %1451 = vmatprep.subr.bf16.mxu0 0
    %1452 = vmatpush1.bf16.msra.mxu0 0
    %1453 = vmatprep.subr.bf16.mxu0 0
    %1454 = vmatpush1.bf16.msra.mxu0 0
    %1455 = vmatprep.subr.bf16.mxu0 0
    %1456 = vmatpush1.bf16.msra.mxu0 0
    %1457 = vmatprep.subr.bf16.mxu0 0
    %1458 = vmatpush1.bf16.msra.mxu0 0
    %1459 = vmatprep.subr.bf16.mxu0 0
    %1460 = vmatpush1.bf16.msra.mxu0 0
    %1461 = vmatprep.subr.bf16.mxu0 0
    %1462 = vmatpush1.bf16.msra.mxu0 0
    %1463 = vmatprep.subr.bf16.mxu0 0
    %1464 = vmatpush1.bf16.msra.mxu0 0
    %1465 = vmatprep.subr.bf16.mxu0 0
    %1466 = vmatpush1.bf16.msra.mxu0 0
    %1467 = vmatprep.mubr.bf16.mxu0 0
    %1468 = vmatmul.mubr.bf16.gmra.mrb[0].mxu0 %v1392
    %v1469 = vpop.f32.mrb[0].mxu0
    %v1470 = vadd.f32 0.0, %v1469
    %v1471 = vpop.f32.mrb[0].mxu0
    %v1472 = vadd.f32 0.0, %v1471
    %v1473 = vpop.f32.mrb[0].mxu0
    %v1474 = vpop.f32.mrb[0].mxu0
    %1475 = vdwg.mxu0
    %v1480 = vrot.slane %v1429, 2
    %v1481 = vrot.slane %v1431, 2
    %v1482 = vrot.slane %v1470, 2
    %v1483 = vrot.slane %v1472, 2
    %v1484 = vrot.slane %v1429, 3
    %v1485 = vrot.slane %v1431, 3
    %v1486 = vrot.slane %v1470, 3
    %v1487 = vrot.slane %v1472, 3
    %v1496 = vadd.f32 %v184, %v1480
    %v1497 = vadd.f32 %v186, %v1481
    %v1498 = vadd.f32 %v261, %v1482
    %v1499 = vadd.f32 %v263, %v1483
    %v1500 = vadd.f32 %v190, %v1484
    %v1501 = vadd.f32 %v192, %v1485
    %v1502 = vadd.f32 %v267, %v1486
    %v1503 = vadd.f32 %v269, %v1487
    %v1504 = vmul.f32 %v1496, 0.5
    %v1505 = vmul.f32 %v1497, 0.5
    %v1506 = vmul.f32 %v1498, 0.5
    %v1507 = vmul.f32 %v1500, 0.5
    %v1508 = vmul.f32 %v1501, 0.5
    %v1509 = vmul.f32 %v1502, 0.5
    %v1510 = vtanh.pop %v1504
    %v1511 = vtanh.pop %v1505
    %v1512 = vtanh.pop %v1506
    %v1513 = vtanh.pop %v1507
    %v1514 = vtanh.pop %v1508
    %v1515 = vtanh.pop %v1509
    %v1516 = vmul.f32 %v1510, 0.5
    %v1517 = vmul.f32 %v1511, 0.5
    %v1518 = vmul.f32 %v1512, 0.5
    %v1519 = vmul.f32 %v1513, 0.5
    %v1520 = vmul.f32 %v1514, 0.5
    %v1521 = vmul.f32 %v1515, 0.5
    %v1522 = vadd.f32 %v1516, 0.5
    %v1523 = vadd.f32 %v1517, 0.5
    %v1524 = vadd.f32 %v1518, 0.5
    %v1525 = vadd.f32 %v1519, 0.5
    %v1526 = vadd.f32 %v1520, 0.5
    %v1527 = vadd.f32 %v1521, 0.5
    %v1528 = vtanh.pop %v1499
    %v1529 = vtanh.pop %v1503
    %v1532 = vrot.slane %v1377, 7
    %v1533 = vrot.slane %v1378, 7
    %v1536 = vmul.f32 %v1523, %v1532
    %v1537 = vmul.f32 %v1526, %v1533
    %v1538 = vmul.f32 %v1522, %v1528
    %v1539 = vmul.f32 %v1525, %v1529
    %v1540 = vadd.f32 %v1536, %v1538
    %v1541 = vadd.f32 %v1537, %v1539
    %v1542 = vtanh.pop %v1540
    %v1543 = vtanh.pop %v1541
    %v1544 = vmul.f32 %v1524, %v1542
    %v1545 = vmul.f32 %v1527, %v1543
    %v1546 = vpack.c.bf16 %v1544, %v1544
    %v1547 = vpack.c.bf16 %v1545, %v1545
    %v1550 = vunpack.c.l.b16 %v1546
    %v1551 = vunpack.c.l.b16 %v1547
    %v1552 = vrot.slane %v1550, 6
    %v1553 = vrot.slane %v1551, 5
    %v1554 = vsel %vm580, %v1553, %v1552
    %v1555 = vpack.c.b16 %v1554, %v1554
    %1557 = vmatprep.subr.bf16.mxu0 %v368
    %1558 = vmatpush1.bf16.msra.mxu0 %v367
    %1559 = vmatprep.subr.bf16.mxu0 %v372
    %1560 = vmatpush1.bf16.msra.mxu0 %v371
    %1561 = vmatprep.subr.bf16.mxu0 %v376
    %1562 = vmatpush1.bf16.msra.mxu0 %v375
    %1563 = vmatprep.subr.bf16.mxu0 %v380
    %1564 = vmatpush1.bf16.msra.mxu0 %v379
    %1565 = vmatprep.subr.bf16.mxu0 %v384
    %1566 = vmatpush1.bf16.msra.mxu0 %v383
    %1567 = vmatprep.subr.bf16.mxu0 %v388
    %1568 = vmatpush1.bf16.msra.mxu0 %v387
    %1569 = vmatprep.subr.bf16.mxu0 %v392
    %1570 = vmatpush1.bf16.msra.mxu0 %v391
    %1571 = vmatprep.subr.bf16.mxu0 %v396
    %1572 = vmatpush1.bf16.msra.mxu0 %v395
    %1573 = vmatprep.subr.bf16.mxu0 0
    %1574 = vmatpush1.bf16.msra.mxu0 0
    %1575 = vmatprep.subr.bf16.mxu0 0
    %1576 = vmatpush1.bf16.msra.mxu0 0
    %1577 = vmatprep.subr.bf16.mxu0 0
    %1578 = vmatpush1.bf16.msra.mxu0 0
    %1579 = vmatprep.subr.bf16.mxu0 0
    %1580 = vmatpush1.bf16.msra.mxu0 0
    %1581 = vmatprep.subr.bf16.mxu0 0
    %1582 = vmatpush1.bf16.msra.mxu0 0
    %1583 = vmatprep.subr.bf16.mxu0 0
    %1584 = vmatpush1.bf16.msra.mxu0 0
    %1585 = vmatprep.subr.bf16.mxu0 0
    %1586 = vmatpush1.bf16.msra.mxu0 0
    %1587 = vmatprep.subr.bf16.mxu0 0
    %1588 = vmatpush1.bf16.msra.mxu0 0
    %1589 = vmatprep.mubr.bf16.mxu0 0
    %1590 = vmatmul.mubr.bf16.gmra.mrb[0].mxu0 %v1555
    %v1591 = vpop.f32.mrb[0].mxu0
    %v1592 = vadd.f32 0.0, %v1591
    %v1593 = vpop.f32.mrb[0].mxu0
    %v1594 = vadd.f32 0.0, %v1593
    %v1595 = vpop.f32.mrb[0].mxu0
    %v1596 = vpop.f32.mrb[0].mxu0
    %1597 = vdwg.mxu0
    %1598 = vmatprep.subr.bf16.mxu0 %v370
    %1599 = vmatpush1.bf16.msra.mxu0 %v369
    %1600 = vmatprep.subr.bf16.mxu0 %v374
    %1601 = vmatpush1.bf16.msra.mxu0 %v373
    %1602 = vmatprep.subr.bf16.mxu0 %v378
    %1603 = vmatpush1.bf16.msra.mxu0 %v377
    %1604 = vmatprep.subr.bf16.mxu0 %v382
    %1605 = vmatpush1.bf16.msra.mxu0 %v381
    %1606 = vmatprep.subr.bf16.mxu0 %v386
    %1607 = vmatpush1.bf16.msra.mxu0 %v385
    %1608 = vmatprep.subr.bf16.mxu0 %v390
    %1609 = vmatpush1.bf16.msra.mxu0 %v389
    %1610 = vmatprep.subr.bf16.mxu0 %v394
    %1611 = vmatpush1.bf16.msra.mxu0 %v393
    %1612 = vmatprep.subr.bf16.mxu0 %v398
    %1613 = vmatpush1.bf16.msra.mxu0 %v397
    %1614 = vmatprep.subr.bf16.mxu0 0
    %1615 = vmatpush1.bf16.msra.mxu0 0
    %1616 = vmatprep.subr.bf16.mxu0 0
    %1617 = vmatpush1.bf16.msra.mxu0 0
    %1618 = vmatprep.subr.bf16.mxu0 0
    %1619 = vmatpush1.bf16.msra.mxu0 0
    %1620 = vmatprep.subr.bf16.mxu0 0
    %1621 = vmatpush1.bf16.msra.mxu0 0
    %1622 = vmatprep.subr.bf16.mxu0 0
    %1623 = vmatpush1.bf16.msra.mxu0 0
    %1624 = vmatprep.subr.bf16.mxu0 0
    %1625 = vmatpush1.bf16.msra.mxu0 0
    %1626 = vmatprep.subr.bf16.mxu0 0
    %1627 = vmatpush1.bf16.msra.mxu0 0
    %1628 = vmatprep.subr.bf16.mxu0 0
    %1629 = vmatpush1.bf16.msra.mxu0 0
    %1630 = vmatprep.mubr.bf16.mxu0 0
    %1631 = vmatmul.mubr.bf16.gmra.mrb[0].mxu0 %v1555
    %v1632 = vpop.f32.mrb[0].mxu0
    %v1633 = vadd.f32 0.0, %v1632
    %v1634 = vpop.f32.mrb[0].mxu0
    %v1635 = vadd.f32 0.0, %v1634
    %v1636 = vpop.f32.mrb[0].mxu0
    %v1637 = vpop.f32.mrb[0].mxu0
    %1638 = vdwg.mxu0
    %v1643 = vrot.slane %v1592, 1
    %v1644 = vrot.slane %v1594, 1
    %v1645 = vrot.slane %v1633, 1
    %v1646 = vrot.slane %v1635, 1
    %v1647 = vrot.slane %v1592, 2
    %v1648 = vrot.slane %v1594, 2
    %v1649 = vrot.slane %v1633, 2
    %v1650 = vrot.slane %v1635, 2
    %v1659 = vadd.f32 %v184, %v1643
    %v1660 = vadd.f32 %v186, %v1644
    %v1661 = vadd.f32 %v261, %v1645
    %v1662 = vadd.f32 %v263, %v1646
    %v1663 = vadd.f32 %v190, %v1647
    %v1664 = vadd.f32 %v192, %v1648
    %v1665 = vadd.f32 %v267, %v1649
    %v1666 = vadd.f32 %v269, %v1650
    %v1667 = vmul.f32 %v1659, 0.5
    %v1668 = vmul.f32 %v1660, 0.5
    %v1669 = vmul.f32 %v1661, 0.5
    %v1670 = vmul.f32 %v1663, 0.5
    %v1671 = vmul.f32 %v1664, 0.5
    %v1672 = vmul.f32 %v1665, 0.5
    %v1673 = vtanh.pop %v1667
    %v1674 = vtanh.pop %v1668
    %v1675 = vtanh.pop %v1669
    %v1676 = vtanh.pop %v1670
    %v1677 = vtanh.pop %v1671
    %v1678 = vtanh.pop %v1672
    %v1679 = vmul.f32 %v1673, 0.5
    %v1680 = vmul.f32 %v1674, 0.5
    %v1681 = vmul.f32 %v1675, 0.5
    %v1682 = vmul.f32 %v1676, 0.5
    %v1683 = vmul.f32 %v1677, 0.5
    %v1684 = vmul.f32 %v1678, 0.5
    %v1685 = vadd.f32 %v1679, 0.5
    %v1686 = vadd.f32 %v1680, 0.5
    %v1687 = vadd.f32 %v1681, 0.5
    %v1688 = vadd.f32 %v1682, 0.5
    %v1689 = vadd.f32 %v1683, 0.5
    %v1690 = vadd.f32 %v1684, 0.5
    %v1691 = vtanh.pop %v1662
    %v1692 = vtanh.pop %v1666
    %v1695 = vrot.slane %v1540, 7
    %v1696 = vrot.slane %v1541, 7
    %v1699 = vmul.f32 %v1686, %v1695
    %v1700 = vmul.f32 %v1689, %v1696
    %v1701 = vmul.f32 %v1685, %v1691
    %v1702 = vmul.f32 %v1688, %v1692
    %v1703 = vadd.f32 %v1699, %v1701
    %v1704 = vadd.f32 %v1700, %v1702
    %v1705 = vtanh.pop %v1703
    %v1706 = vtanh.pop %v1704
    %v1707 = vmul.f32 %v1687, %v1705
    %v1708 = vmul.f32 %v1690, %v1706
    %v1709 = vld [vmem:[%s4] sm:$0xff]
    %v1710 = vld [vmem:[%s4 + $0x8] sm:$0xff]
    %v1711 = vld [vmem:[%s4 + $0x10] sm:$0xff]
    %v1712 = vld [vmem:[%s4 + $0x18] sm:$0xff]
    %v1713 = vld [vmem:[%s4 + $0x20] sm:$0xff]
    %v1714 = vld [vmem:[%s4 + $0x28] sm:$0xff]
    %v1715 = vld [vmem:[%s4 + $0x30] sm:$0xff]
    %v1716 = vld [vmem:[%s4 + $0x38] sm:$0xff]
    %v1717 = vld [vmem:[%s4 + $0x40] sm:$0xff]
    %v1718 = vld [vmem:[%s4 + $0x48] sm:$0xff]
    %v1719 = vld [vmem:[%s4 + $0x50] sm:$0xff]
    %v1720 = vld [vmem:[%s4 + $0x58] sm:$0xff]
    %v1721 = vld [vmem:[%s4 + $0x60] sm:$0xff]
    %v1722 = vld [vmem:[%s4 + $0x68] sm:$0xff]
    %v1723 = vld [vmem:[%s4 + $0x70] sm:$0xff]
    %v1724 = vld [vmem:[%s4 + $0x78] sm:$0xff]
    %v1725 = vld [vmem:[%s5] sm:$0x1]
    %v1727 = vlaneseq
    %v1728 = vshrl.u32 %v1727, 7
    %v1729 = vsub.s32 0, %v1728
    %v1730 = vrot.slane %v1725, %v1729
    %v1734 = vrot.slane %v1707, 7
    %v1735 = vrot.slane %v1708, 6
    %v1736 = vsel %vm580, %v1735, %v1734
    %1738 = vmatprep.subr.mxu0 0.0
    %1739 = vmatpush1.msra.mxu0 %v1709
    %1740 = vmatprep.subr.mxu0 0.0
    %1741 = vmatpush1.msra.mxu0 %v1710
    %1742 = vmatprep.subr.mxu0 0.0
    %1743 = vmatpush1.msra.mxu0 %v1711
    %1744 = vmatprep.subr.mxu0 0.0
    %1745 = vmatpush1.msra.mxu0 %v1712
    %1746 = vmatprep.subr.mxu0 0.0
    %1747 = vmatpush1.msra.mxu0 %v1713
    %1748 = vmatprep.subr.mxu0 0.0
    %1749 = vmatpush1.msra.mxu0 %v1714
    %1750 = vmatprep.subr.mxu0 0.0
    %1751 = vmatpush1.msra.mxu0 %v1715
    %1752 = vmatprep.subr.mxu0 0.0
    %1753 = vmatpush1.msra.mxu0 %v1716
    %1754 = vmatprep.subr.mxu0 0.0
    %1755 = vmatpush1.msra.mxu0 %v1717
    %1756 = vmatprep.subr.mxu0 0.0
    %1757 = vmatpush1.msra.mxu0 %v1718
    %1758 = vmatprep.subr.mxu0 0.0
    %1759 = vmatpush1.msra.mxu0 %v1719
    %1760 = vmatprep.subr.mxu0 0.0
    %1761 = vmatpush1.msra.mxu0 %v1720
    %1762 = vmatprep.subr.mxu0 0.0
    %1763 = vmatpush1.msra.mxu0 %v1721
    %1764 = vmatprep.subr.mxu0 0.0
    %1765 = vmatpush1.msra.mxu0 %v1722
    %1766 = vmatprep.subr.mxu0 0.0
    %1767 = vmatpush1.msra.mxu0 %v1723
    %1768 = vmatprep.subr.mxu0 0.0
    %1769 = vmatpush1.msra.mxu0 %v1724
    %1770 = vmatprep.subr.mxu0 0.0
    %1771 = vmatpush1.msra.mxu0 0.0
    %1772 = vmatprep.subr.mxu0 0.0
    %1773 = vmatpush1.msra.mxu0 0.0
    %1774 = vmatprep.subr.mxu0 0.0
    %1775 = vmatpush1.msra.mxu0 0.0
    %1776 = vmatprep.subr.mxu0 0.0
    %1777 = vmatpush1.msra.mxu0 0.0
    %1778 = vmatprep.subr.mxu0 0.0
    %1779 = vmatpush1.msra.mxu0 0.0
    %1780 = vmatprep.subr.mxu0 0.0
    %1781 = vmatpush1.msra.mxu0 0.0
    %1782 = vmatprep.subr.mxu0 0.0
    %1783 = vmatpush1.msra.mxu0 0.0
    %1784 = vmatprep.subr.mxu0 0.0
    %1785 = vmatpush1.msra.mxu0 0.0
    %1786 = vmatprep.subr.mxu0 0.0
    %1787 = vmatpush1.msra.mxu0 0.0
    %1788 = vmatprep.subr.mxu0 0.0
    %1789 = vmatpush1.msra.mxu0 0.0
    %1790 = vmatprep.subr.mxu0 0.0
    %1791 = vmatpush1.msra.mxu0 0.0
    %1792 = vmatprep.subr.mxu0 0.0
    %1793 = vmatpush1.msra.mxu0 0.0
    %1794 = vmatprep.subr.mxu0 0.0
    %1795 = vmatpush1.msra.mxu0 0.0
    %1796 = vmatprep.subr.mxu0 0.0
    %1797 = vmatpush1.msra.mxu0 0.0
    %1798 = vmatprep.subr.mxu0 0.0
    %1799 = vmatpush1.msra.mxu0 0.0
    %1800 = vmatprep.subr.mxu0 0.0
    %1801 = vmatpush1.msra.mxu0 0.0
    %1802 = vmatprep.mubr.f32.mxu0 0.0
    %1803 = vmatmul.mubr.f32.gmra.mrb[0].mxu0 %v1736
    %v1804 = vpop.f32.mrb[0].mxu0
    %v1805 = vadd.f32 %v1730, %v1804
    %v1806 = vpop.f32.mrb[0].mxu0
    %1807 = vdwg.mxu0
    %vm1808 = vcmask 25600
    %1809 = vst.msk [vmem:[#allocation5] sm:$0x3] %vm1808, %v1805
    // Predicated region
    $region30: #{tpu_custom_call.1} parent=1 // pred_check
      _
    $region31: #{tpu_custom_call.1} parent=1 // pred_check_branch
      %1811 = sbr.rel (0) target = $region33
    $region32: #{tpu_custom_call.1} parent=1 // pred_region
      %s1813 = ssub.s32 32, 32
      %1814 = vsyncadd [#allocation4], %s1813
      %s1816 = sshll.u32 [#allocation5], 4
      %s1817 = int_to_ptr.vmem [resolvable:$true] %s1816
      %1819 = dma.vmem_to_hbm [thread:$0]  %s1817, 32, %s6, [#allocation4]
    $region33: #{tpu_custom_call.1} parent=1 // pred_fallthru
      _
    // Predicated region
    $region34: #{tpu_custom_call.1} parent=1 // pred_check
      _
    $region35: #{tpu_custom_call.1} parent=1 // pred_check_branch
      %1821 = sbr.rel (0) target = $region37
    $region36: #{tpu_custom_call.1} parent=1 // pred_region
      %1822 = dma.done [#allocation4], 32
    $region37: #{tpu_custom_call.1} parent=1 // pred_fallthru
      _
    %1823 = vsyncpa [#allocation3], 1
    %1824 = vsyncpa [#allocation4], 1

</llo_original>
